<compile_context>
chip_gen: v7x
topology: tpu7x:2x2x1
jax: 0.10.0
libtpu: 0.0.40
codegen_flags: <defaults>
</compile_context>

<pallas_src>
import math

import jax
import jax.numpy as jnp
from jax.experimental import pallas as pl
from jax.experimental.pallas import tpu as pltpu

FS = 30.0                 # sampling rate (module arg Fs)
LOW_HZ = 0.66666667
HIGH_HZ = 3.0
EPSILON = 1e-10
FREQ_DELTA = 0.1
NFFT = 5400
NFREQ = NFFT // 2 + 1                          # 2701 rfft bins
TILE_F = 512                                   # frequency tile width (lanes)
NUM_F_TILES = (NFREQ + TILE_F - 1) // TILE_F   # 6
F_PAD = NUM_F_TILES * TILE_F                   # 3072 (padded bins: zero DFT cols)
FREQ_SCALE = FS / float(2 * NFREQ - 1)         # Fs / 5401 (matches torch rfftfreq)


def _selfwave_kernel(p_ref, l_ref, w_ref, o_ref, cen_ref, psd_ref):
    j = pl.program_id(0)

    # ---- prologue: center preds once and cast to bf16 for the MXU ----
    @pl.when(j == 0)
    def _():
        preds = p_ref[...]                                          # (B, T) f32
        centered = preds - jnp.mean(preds, axis=1, keepdims=True)
        cen_ref[...] = centered.astype(cen_ref.dtype)               # bf16

    # ---- fused DFT matmul for this frequency tile: [real | imag] in one dot ----
    ri = jnp.dot(cen_ref[...], w_ref[...],
                 preferred_element_type=jnp.float32)                # (B, 2*TILE_F)
    real = ri[:, :TILE_F]
    imag = ri[:, TILE_F:]
    psd_ref[j] = real * real + imag * imag                          # (B, TILE_F)

    # ---- epilogue: all post-PSD reductions + cheap pointwise losses ----
    @pl.when(j == pl.num_programs(0) - 1)
    def _():
        preds = p_ref[...]                                          # (B, T)
        labels = l_ref[...]
        B, T = preds.shape
        Tn = jnp.float32(T)

        # L1 loss (mean |preds - labels|)
        l1 = jnp.mean(jnp.abs(preds - labels))

        # Neg-Pearson loss (per-row Pearson correlation, no eps like reference)
        sum_x = jnp.sum(preds, axis=1, keepdims=True)
        sum_y = jnp.sum(labels, axis=1, keepdims=True)
        sum_xy = jnp.sum(preds * labels, axis=1, keepdims=True)
        sum_x2 = jnp.sum(preds * preds, axis=1, keepdims=True)
        sum_y2 = jnp.sum(labels * labels, axis=1, keepdims=True)
        denom = jnp.sqrt((Tn * sum_x2 - sum_x * sum_x) *
                         (Tn * sum_y2 - sum_y * sum_y))
        pearson = (Tn * sum_xy - sum_x * sum_y) / denom
        loss_np = jnp.mean(1.0 - pearson)

        psd3 = psd_ref[...]                                         # (NT, B, TILE_F)
        nt = psd3.shape[0]

        # Global bin index / frequency built on a (NT, 1, TILE_F) row (no B broadcast).
        tile_i = jax.lax.broadcasted_iota(jnp.int32, (nt, 1, TILE_F), 0)
        lane_i = jax.lax.broadcasted_iota(jnp.int32, (nt, 1, TILE_F), 2)
        col = tile_i * TILE_F + lane_i                              # global rfft bin
        freqs = jnp.where(col < NFREQ,
                          col.astype(jnp.float32) * FREQ_SCALE,
                          1e9)                                      # padded bins out-of-band

        # Total energy (padded psd bins are exactly 0).
        total_energy = jnp.sum(jnp.sum(psd3, axis=2, keepdims=True),
                               axis=0, keepdims=True)               # (1, B, 1)

        # bandwidth loss: zero = total - use; denom = total + eps
        use_mask = jnp.logical_and(freqs >= LOW_HZ, freqs <= HIGH_HZ)
        use_energy = jnp.sum(jnp.sum(jnp.where(use_mask, psd3, 0.0),
                                     axis=2, keepdims=True),
                             axis=0, keepdims=True)                 # (1, B, 1)
        zero_energy = total_energy - use_energy
        bandwidth_loss = jnp.mean(zero_energy / (total_energy + EPSILON))

        # sparsity loss: first argmax bin -> frequency via affine map (no gather)
        max_val = jnp.max(jnp.max(psd3, axis=2, keepdims=True),
                          axis=0, keepdims=True)                    # (1, B, 1)
        first_idx = jnp.min(jnp.min(jnp.where(psd3 == max_val, col, F_PAD),
                                    axis=2, keepdims=True),
                            axis=0, keepdims=True)                  # (1, B, 1) int32
        signal_freq = first_idx.astype(jnp.float32) * FREQ_SCALE    # (1, B, 1)
        band = jnp.logical_and(freqs >= signal_freq - FREQ_DELTA,
                               freqs <= signal_freq + FREQ_DELTA)   # (NT, B, TILE_F)
        signal_band = jnp.sum(jnp.sum(jnp.where(band, psd3, 0.0),
                                      axis=2, keepdims=True),
                              axis=0, keepdims=True)                # (1, B, 1)
        noise_band = total_energy - signal_band
        sparsity_loss = jnp.mean(noise_band / (total_energy + EPSILON))

        total = l1 + loss_np + bandwidth_loss + sparsity_loss

        lane = jax.lax.broadcasted_iota(jnp.int32, (1, 128), 1)
        o_ref[...] = (jnp.where(lane == 0, total, 0.0)
                      + jnp.where(lane == 1, l1, 0.0)
                      + jnp.where(lane == 2, loss_np, 0.0)
                      + jnp.where(lane == 3, bandwidth_loss, 0.0)
                      + jnp.where(lane == 4, sparsity_loss, 0.0))


def _dft_table(T):
    """Fused [cos | -sin] DFT table, bf16, shape (T, NUM_F_TILES * 2*TILE_F).

    Column block j (width 2*TILE_F) holds cos then -sin columns for rfft bins
    [j*TILE_F, (j+1)*TILE_F); bins >= NFREQ get zero columns so padded
    frequencies never contribute energy.
    """
    t = jnp.arange(T, dtype=jnp.float32)[:, None]                   # (T, 1)
    k = jnp.arange(F_PAD, dtype=jnp.float32)[None, :]               # (1, F_PAD)
    valid = (jnp.arange(F_PAD) < NFREQ)[None, :]
    ang = (2.0 * math.pi / NFFT) * t * k
    C = jnp.where(valid, jnp.cos(ang), 0.0)                         # (T, F_PAD)
    S = jnp.where(valid, -jnp.sin(ang), 0.0)
    C = C.reshape(T, NUM_F_TILES, TILE_F)
    S = S.reshape(T, NUM_F_TILES, TILE_F)
    W = jnp.concatenate([C, S], axis=2).reshape(T, NUM_F_TILES * 2 * TILE_F)
    return W.astype(jnp.bfloat16)


def self_wave_loss(preds, labels):
    """Returns [total, l1, neg_pearson, bandwidth, sparsity] as f32 scalars."""
    B, T = preds.shape
    W = _dft_table(T)

    flops = int(2 * B * T * 2 * F_PAD)                  # fused DFT matmul
    bytes_accessed = int(W.size * 2 + 2 * B * T * 4 + 128 * 4)

    out = pl.pallas_call(
        _selfwave_kernel,
        out_shape=jax.ShapeDtypeStruct((1, 128), jnp.float32),
        grid=(NUM_F_TILES,),
        in_specs=[
            pl.BlockSpec((B, T), lambda j: (0, 0)),                 # preds (resident)
            pl.BlockSpec((B, T), lambda j: (0, 0)),                 # labels (resident)
            pl.BlockSpec((T, 2 * TILE_F), lambda j: (0, j)),        # fused DFT tile
        ],
        out_specs=pl.BlockSpec((1, 128), lambda j: (0, 0)),
        scratch_shapes=[
            pltpu.VMEM((B, T), jnp.bfloat16),                       # centered preds
            pltpu.VMEM((NUM_F_TILES, B, TILE_F), jnp.float32),      # PSD accumulator
        ],
        compiler_params=pltpu.CompilerParams(
            dimension_semantics=("arbitrary",),
            vmem_limit_bytes=40 * 1024 * 1024),
        cost_estimate=pl.CostEstimate(flops=flops, transcendentals=0,
                                      bytes_accessed=bytes_accessed),
    )(preds.astype(jnp.float32), labels.astype(jnp.float32), W)

    return [out[0, 0], out[0, 1], out[0, 2], out[0, 3], out[0, 4]]


if __name__ == "__main__":
    key = jax.random.PRNGKey(0)
    kp, kl = jax.random.split(key)
    B, T = 2, 64                      # small batch of 1-D waveforms (B, T)
    preds = jax.random.normal(kp, (B, T), dtype=jnp.float32)
    labels = jax.random.normal(kl, (B, T), dtype=jnp.float32)

    losses = self_wave_loss(preds, labels)
    losses = [jax.block_until_ready(x) for x in losses]

    assert all(bool(jnp.isfinite(x)) for x in losses)
    print("KERNEL_OK")
</pallas_src>

<mosaic_0001>
module attributes {stable_mosaic.version = 11 : i64} {
  func.func @_selfwave_kernel(%arg0: i32, %arg1: memref<2x64xf32, #tpu.memory_space<vmem>>, %arg2: memref<2x64xf32, #tpu.memory_space<vmem>>, %arg3: memref<64x1024xbf16, #tpu.memory_space<vmem>>, %arg4: memref<1x128xf32, #tpu.memory_space<vmem>>, %arg5: memref<2x64xbf16, #tpu.memory_space<vmem>>, %arg6: memref<6x2x512xf32, #tpu.memory_space<vmem>>) attributes {dimension_semantics = [#tpu.dimension_semantics<arbitrary>], iteration_bounds = array<i64: 6>, scalar_prefetch = 0 : i64, scratch_operands = 2 : i64, tpu.core_type = #tpu.core_type<tc>, window_params = [{pipeline_mode = #tpu.pipeline_mode<synchronous>, transform_indices = @transform_0, window_bounds = array<i64: 2, 64>}, {pipeline_mode = #tpu.pipeline_mode<synchronous>, transform_indices = @transform_1, window_bounds = array<i64: 2, 64>}, {transform_indices = @transform_2, window_bounds = array<i64: 64, 1024>}, {pipeline_mode = #tpu.pipeline_mode<synchronous>, transform_indices = @transform_3, window_bounds = array<i64: 1, 128>}]} {
    %c0_i32 = arith.constant 0 : i32
    %0 = arith.cmpi eq, %arg0, %c0_i32 : i32
    %1 = arith.extui %0 : i1 to i32
    %c0_i32_0 = arith.constant 0 : i32
    %2 = arith.cmpi ne, %1, %c0_i32_0 : i32
    scf.if %2 {
      %c0_7 = arith.constant 0 : index
      %c0_8 = arith.constant 0 : index
      %18 = vector.load %arg1[%c0_7, %c0_8] : memref<2x64xf32, #tpu.memory_space<vmem>>, vector<2x64xf32>
      %cst_9 = arith.constant dense<0.000000e+00> : vector<2xf32>
      %19 = vector.multi_reduction <add>, %18, %cst_9 [1] : vector<2x64xf32> to vector<2xf32>
      %20 = vector.shape_cast %19 : vector<2xf32> to vector<2x1xf32>
      %cst_10 = arith.constant 6.400000e+01 : f32
      %21 = vector.broadcast %cst_10 : f32 to vector<2x1xf32>
      %22 = arith.divf %20, %21 : vector<2x1xf32>
      %23 = vector.broadcast %22 : vector<2x1xf32> to vector<2x64xf32>
      %24 = arith.subf %18, %23 : vector<2x64xf32>
      %25 = arith.truncf %24 : vector<2x64xf32> to vector<2x64xbf16>
      %c0_11 = arith.constant 0 : index
      %c0_12 = arith.constant 0 : index
      %26 = vector.load %arg5[%c0_11, %c0_12] : memref<2x64xbf16, #tpu.memory_space<vmem>>, vector<2x64xbf16>
      tpu.vector_store %arg5[%c0_11, %c0_12], %25 {strides = array<i32>} : memref<2x64xbf16, #tpu.memory_space<vmem>>, vector<2x64xbf16>,
    } else {
    }
    %c0 = arith.constant 0 : index
    %c0_1 = arith.constant 0 : index
    %3 = vector.load %arg5[%c0, %c0_1] : memref<2x64xbf16, #tpu.memory_space<vmem>>, vector<2x64xbf16>
    %c0_2 = arith.constant 0 : index
    %c0_3 = arith.constant 0 : index
    %4 = vector.load %arg3[%c0_2, %c0_3] : memref<64x1024xbf16, #tpu.memory_space<vmem>>, vector<64x1024xbf16>
    %cst = arith.constant dense<0.000000e+00> : vector<2x1024xf32>
    %5 = tpu.matmul %3, %4, %cst {dimension_numbers = #tpu.dot_dimension_numbers<[1], [0], [0], [1], [0, 0, 1, 1], [], []>} : vector<2x64xbf16>, vector<64x1024xbf16>, vector<2x1024xf32> -> vector<2x1024xf32>
    %6 = vector.extract_strided_slice %5 {offsets = [0, 0], sizes = [2, 512], strides = [1, 1]} : vector<2x1024xf32> to vector<2x512xf32>
    %7 = vector.extract_strided_slice %5 {offsets = [0, 512], sizes = [2, 512], strides = [1, 1]} : vector<2x1024xf32> to vector<2x512xf32>
    %8 = arith.mulf %6, %6 : vector<2x512xf32>
    %9 = arith.mulf %7, %7 : vector<2x512xf32>
    %10 = arith.addf %8, %9 : vector<2x512xf32>
    %11 = arith.index_cast %arg0 : i32 to index
    %c0_4 = arith.constant 0 : index
    %c0_5 = arith.constant 0 : index
    %12 = vector.load %arg6[%11, %c0_4, %c0_5] : memref<6x2x512xf32, #tpu.memory_space<vmem>>, vector<1x2x512xf32>
    %13 = vector.shape_cast %12 : vector<1x2x512xf32> to vector<2x512xf32>
    %14 = vector.shape_cast %10 : vector<2x512xf32> to vector<1x2x512xf32>
    tpu.vector_store %arg6[%11, %c0_4, %c0_5], %14 {strides = array<i32>} : memref<6x2x512xf32, #tpu.memory_space<vmem>>, vector<1x2x512xf32>,
    %c5_i32 = arith.constant 5 : i32
    %15 = arith.cmpi eq, %arg0, %c5_i32 : i32
    %16 = arith.extui %15 : i1 to i32
    %c0_i32_6 = arith.constant 0 : i32
    %17 = arith.cmpi ne, %16, %c0_i32_6 : i32
    scf.if %17 {
      %c0_7 = arith.constant 0 : index
      %c0_8 = arith.constant 0 : index
      %18 = vector.load %arg1[%c0_7, %c0_8] : memref<2x64xf32, #tpu.memory_space<vmem>>, vector<2x64xf32>
      %c0_9 = arith.constant 0 : index
      %c0_10 = arith.constant 0 : index
      %19 = vector.load %arg2[%c0_9, %c0_10] : memref<2x64xf32, #tpu.memory_space<vmem>>, vector<2x64xf32>
      %20 = arith.subf %18, %19 : vector<2x64xf32>
      %21 = math.absf %20 : vector<2x64xf32>
      %22 = vector.shape_cast %21 : vector<2x64xf32> to vector<1x2x64xf32>
      %cst_11 = arith.constant dense<0.000000e+00> : vector<1xf32>
      %23 = vector.multi_reduction <add>, %22, %cst_11 [1, 2] : vector<1x2x64xf32> to vector<1xf32>
      %24 = vector.shape_cast %23 : vector<1xf32> to vector<1x1x1xf32>
      %25 = vector.extract %24[0, 0, 0] : f32 from vector<1x1x1xf32>
      %cst_12 = arith.constant 1.280000e+02 : f32
      %26 = arith.divf %25, %cst_12 : f32
      %cst_13 = arith.constant dense<0.000000e+00> : vector<2xf32>
      %27 = vector.multi_reduction <add>, %18, %cst_13 [1] : vector<2x64xf32> to vector<2xf32>
      %28 = vector.shape_cast %27 : vector<2xf32> to vector<2x1xf32>
      %cst_14 = arith.constant dense<0.000000e+00> : vector<2xf32>
      %29 = vector.multi_reduction <add>, %19, %cst_14 [1] : vector<2x64xf32> to vector<2xf32>
      %30 = vector.shape_cast %29 : vector<2xf32> to vector<2x1xf32>
      %31 = arith.mulf %18, %19 : vector<2x64xf32>
      %cst_15 = arith.constant dense<0.000000e+00> : vector<2xf32>
      %32 = vector.multi_reduction <add>, %31, %cst_15 [1] : vector<2x64xf32> to vector<2xf32>
      %33 = vector.shape_cast %32 : vector<2xf32> to vector<2x1xf32>
      %34 = arith.mulf %18, %18 : vector<2x64xf32>
      %cst_16 = arith.constant dense<0.000000e+00> : vector<2xf32>
      %35 = vector.multi_reduction <add>, %34, %cst_16 [1] : vector<2x64xf32> to vector<2xf32>
      %36 = vector.shape_cast %35 : vector<2xf32> to vector<2x1xf32>
      %37 = arith.mulf %19, %19 : vector<2x64xf32>
      %cst_17 = arith.constant dense<0.000000e+00> : vector<2xf32>
      %38 = vector.multi_reduction <add>, %37, %cst_17 [1] : vector<2x64xf32> to vector<2xf32>
      %39 = vector.shape_cast %38 : vector<2xf32> to vector<2x1xf32>
      %cst_18 = arith.constant 6.400000e+01 : f32
      %40 = vector.broadcast %cst_18 : f32 to vector<2x1xf32>
      %41 = arith.mulf %40, %36 : vector<2x1xf32>
      %42 = arith.mulf %28, %28 : vector<2x1xf32>
      %43 = arith.subf %41, %42 : vector<2x1xf32>
      %cst_19 = arith.constant 6.400000e+01 : f32
      %44 = vector.broadcast %cst_19 : f32 to vector<2x1xf32>
      %45 = arith.mulf %44, %39 : vector<2x1xf32>
      %46 = arith.mulf %30, %30 : vector<2x1xf32>
      %47 = arith.subf %45, %46 : vector<2x1xf32>
      %48 = arith.mulf %43, %47 : vector<2x1xf32>
      %49 = math.sqrt %48 : vector<2x1xf32>
      %cst_20 = arith.constant 6.400000e+01 : f32
      %50 = vector.broadcast %cst_20 : f32 to vector<2x1xf32>
      %51 = arith.mulf %50, %33 : vector<2x1xf32>
      %52 = arith.mulf %28, %30 : vector<2x1xf32>
      %53 = arith.subf %51, %52 : vector<2x1xf32>
      %54 = arith.divf %53, %49 : vector<2x1xf32>
      %cst_21 = arith.constant 1.000000e+00 : f32
      %55 = vector.broadcast %cst_21 : f32 to vector<2x1xf32>
      %56 = arith.subf %55, %54 : vector<2x1xf32>
      %57 = vector.shape_cast %56 : vector<2x1xf32> to vector<1x2x1xf32>
      %cst_22 = arith.constant dense<0.000000e+00> : vector<1xf32>
      %58 = vector.multi_reduction <add>, %57, %cst_22 [1, 2] : vector<1x2x1xf32> to vector<1xf32>
      %59 = vector.shape_cast %58 : vector<1xf32> to vector<1x1x1xf32>
      %60 = vector.extract %59[0, 0, 0] : f32 from vector<1x1x1xf32>
      %cst_23 = arith.constant 2.000000e+00 : f32
      %61 = arith.divf %60, %cst_23 : f32
      %c0_24 = arith.constant 0 : index
      %c0_25 = arith.constant 0 : index
      %c0_26 = arith.constant 0 : index
      %62 = vector.load %arg6[%c0_24, %c0_25, %c0_26] : memref<6x2x512xf32, #tpu.memory_space<vmem>>, vector<6x2x512xf32>
      %63 = tpu.iota {dimensions = array<i32: 0>} : vector<6x1x512xi32>
      %64 = tpu.iota {dimensions = array<i32: 2>} : vector<6x1x512xi32>
      %c512_i32 = arith.constant 512 : i32
      %65 = vector.broadcast %c512_i32 : i32 to vector<6x1x512xi32>
      %66 = arith.muli %63, %65 : vector<6x1x512xi32>
      %67 = arith.addi %66, %64 : vector<6x1x512xi32>
      %c2701_i32 = arith.constant 2701 : i32
      %68 = vector.broadcast %c2701_i32 : i32 to vector<6x1x512xi32>
      %69 = arith.cmpi slt, %67, %68 : vector<6x1x512xi32>
      %70 = arith.sitofp %67 : vector<6x1x512xi32> to vector<6x1x512xf32>
      %cst_27 = arith.constant 0.00555452704 : f32
      %71 = vector.broadcast %cst_27 : f32 to vector<6x1x512xf32>
      %72 = arith.mulf %70, %71 : vector<6x1x512xf32>
      %cst_28 = arith.constant 1.000000e+09 : f32
      %73 = vector.broadcast %cst_28 : f32 to vector<6x1x512xf32>
      %74 = arith.select %69, %72, %73 : vector<6x1x512xi1>, vector<6x1x512xf32>
      %cst_29 = arith.constant dense<0.000000e+00> : vector<6x2xf32>
      %75 = vector.multi_reduction <add>, %62, %cst_29 [2] : vector<6x2x512xf32> to vector<6x2xf32>
      %76 = vector.shape_cast %75 : vector<6x2xf32> to vector<6x2x1xf32>
      %cst_30 = arith.constant dense<0.000000e+00> : vector<2x1xf32>
      %77 = vector.multi_reduction <add>, %76, %cst_30 [0] : vector<6x2x1xf32> to vector<2x1xf32>
      %78 = vector.shape_cast %77 : vector<2x1xf32> to vector<1x2x1xf32>
      %cst_31 = arith.constant 0.666666686 : f32
      %79 = vector.broadcast %cst_31 : f32 to vector<6x1x512xf32>
      %80 = arith.cmpf oge, %74, %79 : vector<6x1x512xf32>
      %cst_32 = arith.constant 3.000000e+00 : f32
      %81 = vector.broadcast %cst_32 : f32 to vector<6x1x512xf32>
      %82 = arith.cmpf ole, %74, %81 : vector<6x1x512xf32>
      %83 = arith.andi %80, %82 : vector<6x1x512xi1>
      %cst_33 = arith.constant 0.000000e+00 : f32
      %84 = vector.shape_cast %83 : vector<6x1x512xi1> to vector<6x1x512xi1>
      %85 = vector.broadcast %84 : vector<6x1x512xi1> to vector<6x2x512xi1>
      %86 = vector.broadcast %cst_33 : f32 to vector<6x2x512xf32>
      %87 = arith.select %85, %62, %86 : vector<6x2x512xi1>, vector<6x2x512xf32>
      %cst_34 = arith.constant dense<0.000000e+00> : vector<6x2xf32>
      %88 = vector.multi_reduction <add>, %87, %cst_34 [2] : vector<6x2x512xf32> to vector<6x2xf32>
      %89 = vector.shape_cast %88 : vector<6x2xf32> to vector<6x2x1xf32>
      %cst_35 = arith.constant dense<0.000000e+00> : vector<2x1xf32>
      %90 = vector.multi_reduction <add>, %89, %cst_35 [0] : vector<6x2x1xf32> to vector<2x1xf32>
      %91 = vector.shape_cast %90 : vector<2x1xf32> to vector<1x2x1xf32>
      %92 = arith.subf %78, %91 : vector<1x2x1xf32>
      %cst_36 = arith.constant 1.000000e-10 : f32
      %93 = vector.broadcast %cst_36 : f32 to vector<1x2x1xf32>
      %94 = arith.addf %78, %93 : vector<1x2x1xf32>
      %95 = arith.divf %92, %94 : vector<1x2x1xf32>
      %96 = vector.shape_cast %95 : vector<1x2x1xf32> to vector<1x1x2x1xf32>
      %cst_37 = arith.constant dense<0.000000e+00> : vector<1xf32>
      %97 = vector.multi_reduction <add>, %96, %cst_37 [1, 2, 3] : vector<1x1x2x1xf32> to vector<1xf32>
      %98 = vector.shape_cast %97 : vector<1xf32> to vector<1x1x1x1xf32>
      %99 = vector.extract %98[0, 0, 0, 0] : f32 from vector<1x1x1x1xf32>
      %cst_38 = arith.constant 2.000000e+00 : f32
      %100 = arith.divf %99, %cst_38 : f32
      %cst_39 = arith.constant dense<0xFF800000> : vector<6x2xf32>
      %101 = vector.multi_reduction <maximumf>, %62, %cst_39 [2] : vector<6x2x512xf32> to vector<6x2xf32>
      %102 = vector.shape_cast %101 : vector<6x2xf32> to vector<6x2x1xf32>
      %cst_40 = arith.constant dense<0xFF800000> : vector<2x1xf32>
      %103 = vector.multi_reduction <maximumf>, %102, %cst_40 [0] : vector<6x2x1xf32> to vector<2x1xf32>
      %104 = vector.shape_cast %103 : vector<2x1xf32> to vector<1x2x1xf32>
      %105 = vector.broadcast %104 : vector<1x2x1xf32> to vector<6x2x512xf32>
      %106 = arith.cmpf oeq, %62, %105 : vector<6x2x512xf32>
      %c3072_i32 = arith.constant 3072 : i32
      %107 = vector.shape_cast %67 : vector<6x1x512xi32> to vector<6x1x512xi32>
      %108 = vector.broadcast %107 : vector<6x1x512xi32> to vector<6x2x512xi32>
      %109 = vector.broadcast %c3072_i32 : i32 to vector<6x2x512xi32>
      %110 = arith.select %106, %108, %109 : vector<6x2x512xi1>, vector<6x2x512xi32>
      %cst_41 = arith.constant dense<2147483647> : vector<6x2xi32>
      %111 = vector.multi_reduction <minsi>, %110, %cst_41 [2] : vector<6x2x512xi32> to vector<6x2xi32>
      %112 = vector.shape_cast %111 : vector<6x2xi32> to vector<6x2x1xi32>
      %cst_42 = arith.constant dense<2147483647> : vector<2x1xi32>
      %113 = vector.multi_reduction <minsi>, %112, %cst_42 [0] : vector<6x2x1xi32> to vector<2x1xi32>
      %114 = vector.shape_cast %113 : vector<2x1xi32> to vector<1x2x1xi32>
      %115 = arith.sitofp %114 : vector<1x2x1xi32> to vector<1x2x1xf32>
      %cst_43 = arith.constant 0.00555452704 : f32
      %116 = vector.broadcast %cst_43 : f32 to vector<1x2x1xf32>
      %117 = arith.mulf %115, %116 : vector<1x2x1xf32>
      %cst_44 = arith.constant 1.000000e-01 : f32
      %118 = vector.broadcast %cst_44 : f32 to vector<1x2x1xf32>
      %119 = arith.subf %117, %118 : vector<1x2x1xf32>
      %120 = vector.broadcast %74 : vector<6x1x512xf32> to vector<6x2x512xf32>
      %121 = vector.broadcast %119 : vector<1x2x1xf32> to vector<6x2x512xf32>
      %122 = arith.cmpf oge, %120, %121 : vector<6x2x512xf32>
      %cst_45 = arith.constant 1.000000e-01 : f32
      %123 = vector.broadcast %cst_45 : f32 to vector<1x2x1xf32>
      %124 = arith.addf %117, %123 : vector<1x2x1xf32>
      %125 = vector.broadcast %74 : vector<6x1x512xf32> to vector<6x2x512xf32>
      %126 = vector.broadcast %124 : vector<1x2x1xf32> to vector<6x2x512xf32>
      %127 = arith.cmpf ole, %125, %126 : vector<6x2x512xf32>
      %128 = arith.andi %122, %127 : vector<6x2x512xi1>
      %cst_46 = arith.constant 0.000000e+00 : f32
      %129 = vector.broadcast %cst_46 : f32 to vector<6x2x512xf32>
      %130 = arith.select %128, %62, %129 : vector<6x2x512xi1>, vector<6x2x512xf32>
      %cst_47 = arith.constant dense<0.000000e+00> : vector<6x2xf32>
      %131 = vector.multi_reduction <add>, %130, %cst_47 [2] : vector<6x2x512xf32> to vector<6x2xf32>
      %132 = vector.shape_cast %131 : vector<6x2xf32> to vector<6x2x1xf32>
      %cst_48 = arith.constant dense<0.000000e+00> : vector<2x1xf32>
      %133 = vector.multi_reduction <add>, %132, %cst_48 [0] : vector<6x2x1xf32> to vector<2x1xf32>
      %134 = vector.shape_cast %133 : vector<2x1xf32> to vector<1x2x1xf32>
      %135 = arith.subf %78, %134 : vector<1x2x1xf32>
      %cst_49 = arith.constant 1.000000e-10 : f32
      %136 = vector.broadcast %cst_49 : f32 to vector<1x2x1xf32>
      %137 = arith.addf %78, %136 : vector<1x2x1xf32>
      %138 = arith.divf %135, %137 : vector<1x2x1xf32>
      %139 = vector.shape_cast %138 : vector<1x2x1xf32> to vector<1x1x2x1xf32>
      %cst_50 = arith.constant dense<0.000000e+00> : vector<1xf32>
      %140 = vector.multi_reduction <add>, %139, %cst_50 [1, 2, 3] : vector<1x1x2x1xf32> to vector<1xf32>
      %141 = vector.shape_cast %140 : vector<1xf32> to vector<1x1x1x1xf32>
      %142 = vector.extract %141[0, 0, 0, 0] : f32 from vector<1x1x1x1xf32>
      %cst_51 = arith.constant 2.000000e+00 : f32
      %143 = arith.divf %142, %cst_51 : f32
      %144 = arith.addf %26, %61 : f32
      %145 = arith.addf %144, %100 : f32
      %146 = arith.addf %145, %143 : f32
      %147 = tpu.iota {dimensions = array<i32: 1>} : vector<1x128xi32>
      %c0_i32_52 = arith.constant 0 : i32
      %148 = vector.broadcast %c0_i32_52 : i32 to vector<1x128xi32>
      %149 = arith.cmpi eq, %147, %148 : vector<1x128xi32>
      %cst_53 = arith.constant 0.000000e+00 : f32
      %150 = vector.broadcast %146 : f32 to vector<1x128xf32>
      %151 = vector.broadcast %cst_53 : f32 to vector<1x128xf32>
      %152 = arith.select %149, %150, %151 : vector<1x128xi1>, vector<1x128xf32>
      %c1_i32 = arith.constant 1 : i32
      %153 = vector.broadcast %c1_i32 : i32 to vector<1x128xi32>
      %154 = arith.cmpi eq, %147, %153 : vector<1x128xi32>
      %cst_54 = arith.constant 0.000000e+00 : f32
      %155 = vector.broadcast %26 : f32 to vector<1x128xf32>
      %156 = vector.broadcast %cst_54 : f32 to vector<1x128xf32>
      %157 = arith.select %154, %155, %156 : vector<1x128xi1>, vector<1x128xf32>
      %158 = arith.addf %152, %157 : vector<1x128xf32>
      %c2_i32 = arith.constant 2 : i32
      %159 = vector.broadcast %c2_i32 : i32 to vector<1x128xi32>
      %160 = arith.cmpi eq, %147, %159 : vector<1x128xi32>
      %cst_55 = arith.constant 0.000000e+00 : f32
      %161 = vector.broadcast %61 : f32 to vector<1x128xf32>
      %162 = vector.broadcast %cst_55 : f32 to vector<1x128xf32>
      %163 = arith.select %160, %161, %162 : vector<1x128xi1>, vector<1x128xf32>
      %164 = arith.addf %158, %163 : vector<1x128xf32>
      %c3_i32 = arith.constant 3 : i32
      %165 = vector.broadcast %c3_i32 : i32 to vector<1x128xi32>
      %166 = arith.cmpi eq, %147, %165 : vector<1x128xi32>
      %cst_56 = arith.constant 0.000000e+00 : f32
      %167 = vector.broadcast %100 : f32 to vector<1x128xf32>
      %168 = vector.broadcast %cst_56 : f32 to vector<1x128xf32>
      %169 = arith.select %166, %167, %168 : vector<1x128xi1>, vector<1x128xf32>
      %170 = arith.addf %164, %169 : vector<1x128xf32>
      %c4_i32 = arith.constant 4 : i32
      %171 = vector.broadcast %c4_i32 : i32 to vector<1x128xi32>
      %172 = arith.cmpi eq, %147, %171 : vector<1x128xi32>
      %cst_57 = arith.constant 0.000000e+00 : f32
      %173 = vector.broadcast %143 : f32 to vector<1x128xf32>
      %174 = vector.broadcast %cst_57 : f32 to vector<1x128xf32>
      %175 = arith.select %172, %173, %174 : vector<1x128xi1>, vector<1x128xf32>
      %176 = arith.addf %170, %175 : vector<1x128xf32>
      %c0_58 = arith.constant 0 : index
      %c0_59 = arith.constant 0 : index
      %177 = vector.load %arg4[%c0_58, %c0_59] : memref<1x128xf32, #tpu.memory_space<vmem>>, vector<1x128xf32>
      tpu.vector_store %arg4[%c0_58, %c0_59], %176 {strides = array<i32>} : memref<1x128xf32, #tpu.memory_space<vmem>>, vector<1x128xf32>,
    } else {
    }
    return
  }
  func.func @transform_0(%arg0: i32) -> (i32, i32) {
    %c0_i32 = arith.constant 0 : i32
    %c0_i32_0 = arith.constant 0 : i32
    %c0_i32_1 = arith.constant 0 : i32
    return %c0_i32, %c0_i32_0 : i32, i32
  }
  func.func @transform_1(%arg0: i32) -> (i32, i32) {
    %c0_i32 = arith.constant 0 : i32
    %c0_i32_0 = arith.constant 0 : i32
    %c0_i32_1 = arith.constant 0 : i32
    return %c0_i32, %c0_i32_0 : i32, i32
  }
  func.func @transform_2(%arg0: i32) -> (i32, i32) {
    %c0_i32 = arith.constant 0 : i32
    %c0_i32_0 = arith.constant 0 : i32
    return %c0_i32, %arg0 : i32, i32
  }
  func.func @transform_3(%arg0: i32) -> (i32, i32) {
    %c0_i32 = arith.constant 0 : i32
    %c0_i32_0 = arith.constant 0 : i32
    %c0_i32_1 = arith.constant 0 : i32
    return %c0_i32, %c0_i32_0 : i32, i32
  }
}

</mosaic_0001>

<llo_original>
// kernel: tpu_custom_call.1
$region0: #{tpu_custom_call.1}
  #allocation0 [shape = 'u32[]', space=smem, size = 0x4, offset = 0x4, fixed_abs, tag = 'smem constant byte address 0x4 - core index']
  #allocation1 [shape = 'u32[144,128]{1,0:T(1,128)}', space=vmem, size = 0x12000, scoped, tag = 'internal scratch']
  #allocation2 [shape = 'bf16[2,64]{1,0:T(2,128)(2,1)}', space=vmem, size = 0x200, scoped, tag = 'scratch operand']
  #allocation3 [shape = 'f32[6,2,512]{2,1,0:T(2,128)}', space=vmem, size = 0x6000, scoped, tag = 'scratch operand']
  %s0 = inlined_call_operand.hbm [shape: f32[2,64], index: 0, kind: input, shape index: {}]
  %s1 = inlined_call_operand.vmem [shape: f32[2,64], index: 1, kind: input, shape index: {}]
  %s2 = inlined_call_operand.hbm [shape: bf16[64,6144], index: 2, kind: input, shape index: {}]
  %s3 = inlined_call_operand.hbm [shape: f32[1,128], index: 3, kind: output, shape index: {}]
  %s4 = sld [smem:[#allocation0]]
  $region61: #{tpu_custom_call.1} parent=0
    _
  %s6 = ssub.s32 1, %s4
  %s7 = scalar_select 0, %s6, %s4
  $region1: #{tpu_custom_call.1} parent=0
    #allocation4 [shape = 'u8[1024]{0}', space=vmem, size = 0x400, scoped, tag = 'input window, operand 0, single buffered']
    #allocation5 [shape = 's32[2]{0}', space=sflag, size = 0x8, scoped, tag = 'scoped memory for tpu_custom_call.1']
    #allocation6 [shape = 's32[2]{0}', space=sflag, size = 0x8, scoped, tag = 'scoped memory for tpu_custom_call.1']
    #allocation7 [shape = 'u8[262144]{0}', space=vmem, size = 0x40000, scoped, tag = 'input window, operand 2']
    #allocation8 [shape = 's32[2]{0}', space=sflag, size = 0x8, scoped, tag = 'scoped memory for tpu_custom_call.1']
    #allocation9 [shape = 'u8[512]{0}', space=vmem, size = 0x400, scoped, tag = 'output window, operand 0, single buffered']
    %8 = vsyncpa [#allocation5], 0
    %9 = vsyncpa [#allocation8], 0
    %s10 = scalar_lea.sflag [#allocation8], 1
    %11 = vsyncpa %s10, 0
    %12 = vsyncpa [#allocation6], 0
    loop: start=0, step=1, limit=8
    $region2: #{tpu_custom_call.1} parent=1 // loop_pre_header
      _
    $region3: #{tpu_custom_call.1} parent=1 // loop_header
      %s14 = sphi 0, %s18
      %p15 = scmp.ge.s32.totalorder %s14, 8
      %s22 = sphi 0, %s22
      %s24 = sphi 0, %s22
      %s25 = sphi 0, %s24
      %s39 = sphi 0, %s25
      %s43 = sphi 0, %s43
      %s45 = sphi 0, %s43
      %s46 = sphi 0, %s45
      %s60 = sphi 0, %s46
      %s66 = sphi 0, %s68
      %s69 = sphi 0, %s66
      %s70 = sphi 0, %s69
      %s86 = sphi 0, %s70
      %s90 = sphi 0, %s90
      %s92 = sphi 0, %s90
      %s93 = sphi 0, %s92
      %s107 = sphi 0, %s93
    $region4: #{tpu_custom_call.1} parent=1 // loop_header_branch
      %17 = sbr.rel (%p15) target = $region8
    $region5: #{tpu_custom_call.1} parent=1 // loop_body
      %s19 = ssub.s32 %s14, 1
      %s20 = ssub.s32 %s14, 2
      %s21 = sadd.s32 %s14, 1
      %s23 = sadd.s32 %s22, 1
      %p26 = scmp.eq.s32.totalorder %s14, 5
      %p27 = scmp.ne.s32.totalorder %s22, %s24
      %p28 = scmp.eq.s32.totalorder %s14, 0
      %p29 = por %p27, %p28
      %p30 = scmp.ne.s32.totalorder %s22, %s24
      %p31 = scmp.eq.s32.totalorder %s19, 5
      %p32 = por %p30, %p31
      %p33 = scmp.ne.s32.totalorder %s24, %s25
      %p34 = scmp.eq.s32.totalorder %s19, 0
      %p35 = por %p33, %p34
      %p36 = scmp.ne.s32.totalorder %s24, %s25
      %p37 = scmp.eq.s32.totalorder %s20, 5
      %p38 = por %p36, %p37
      %p40 = scmp.ne.s32.totalorder %s25, %s39
      %p41 = scmp.eq.s32.totalorder %s20, 0
      %p42 = por %p40, %p41
      %s44 = sadd.s32 %s43, 1
      %p47 = scmp.eq.s32.totalorder %s14, 5
      %p48 = scmp.ne.s32.totalorder %s43, %s45
      %p49 = scmp.eq.s32.totalorder %s14, 0
      %p50 = por %p48, %p49
      %p51 = scmp.ne.s32.totalorder %s43, %s45
      %p52 = scmp.eq.s32.totalorder %s19, 5
      %p53 = por %p51, %p52
      %p54 = scmp.ne.s32.totalorder %s45, %s46
      %p55 = scmp.eq.s32.totalorder %s19, 0
      %p56 = por %p54, %p55
      %p57 = scmp.ne.s32.totalorder %s45, %s46
      %p58 = scmp.eq.s32.totalorder %s20, 5
      %p59 = por %p57, %p58
      %p61 = scmp.ne.s32.totalorder %s46, %s60
      %p62 = scmp.eq.s32.totalorder %s20, 0
      %p63 = por %p61, %p62
      %s64 = ssub.s32 %s14, %s21
      %p65 = scmp.eq.s32.totalorder %s64, 0
      %s67 = sadd.s32 %s66, 1
      %s68 = scalar_select %p65, %s66, %s67
      %p71 = pneg %p65
      %p72 = scmp.eq.s32.totalorder %s14, 5
      %p73 = por %p71, %p72
      %p74 = scmp.ne.s32.totalorder %s66, %s69
      %p75 = scmp.eq.s32.totalorder %s14, 0
      %p76 = por %p74, %p75
      %p77 = scmp.ne.s32.totalorder %s66, %s69
      %p78 = scmp.eq.s32.totalorder %s19, 5
      %p79 = por %p77, %p78
      %p80 = scmp.ne.s32.totalorder %s69, %s70
      %p81 = scmp.eq.s32.totalorder %s19, 0
      %p82 = por %p80, %p81
      %p83 = scmp.ne.s32.totalorder %s69, %s70
      %p84 = scmp.eq.s32.totalorder %s20, 5
      %p85 = por %p83, %p84
      %p87 = scmp.ne.s32.totalorder %s70, %s86
      %p88 = scmp.eq.s32.totalorder %s20, 0
      %p89 = por %p87, %p88
      %s91 = sadd.s32 %s90, 1
      %p94 = scmp.eq.s32.totalorder %s14, 5
      %p95 = scmp.ne.s32.totalorder %s90, %s92
      %p96 = scmp.eq.s32.totalorder %s14, 0
      %p97 = por %p95, %p96
      %p98 = scmp.ne.s32.totalorder %s90, %s92
      %p99 = scmp.eq.s32.totalorder %s19, 5
      %p100 = por %p98, %p99
      %p101 = scmp.ne.s32.totalorder %s92, %s93
      %p102 = scmp.eq.s32.totalorder %s19, 0
      %p103 = por %p101, %p102
      %p104 = scmp.ne.s32.totalorder %s92, %s93
      %p105 = scmp.eq.s32.totalorder %s20, 5
      %p106 = por %p104, %p105
      %p108 = scmp.ne.s32.totalorder %s93, %s107
      %p109 = scmp.eq.s32.totalorder %s20, 0
      %p110 = por %p108, %p109
      %p111 = scmp.le.s32.totalorder 1, %s14
      %p112 = scmp.lt.s32.totalorder %s14, 7
      %p113 = pnand %p111, %p112
      %p114 = pneg %p113
      // Predicated region
      $region9: #{tpu_custom_call.1} parent=5 // pred_check
        _
      $region10: #{tpu_custom_call.1} parent=5 // pred_check_branch
        %116 = sbr.rel (%p113) target = $region12
      $region11: #{tpu_custom_call.1} parent=5 // pred_region
        %s117 = ssub.s32 %s14, 1
        // Predicated region
        $region13: #{tpu_custom_call.1} parent=11 // pred_check
          %p118 = pneg %p35
        $region14: #{tpu_custom_call.1} parent=11 // pred_check_branch
          %120 = sbr.rel (%p118) target = $region16
        $region15: #{tpu_custom_call.1} parent=11 // pred_region
          %s122 = ssub.s32 32, 32
          %123 = vsyncadd [#allocation5], %s122
          %s125 = sshll.u32 [#allocation4], 4
          %s126 = int_to_ptr.vmem [resolvable:$true] %s125
          %128 = dma.hbm_to_vmem [thread:$0]  %s0, 32, %s126, [#allocation5]
        $region16: #{tpu_custom_call.1} parent=11 // pred_fallthru
          _
        // Predicated region
        $region17: #{tpu_custom_call.1} parent=11 // pred_check
          %p129 = pneg %p56
        $region18: #{tpu_custom_call.1} parent=11 // pred_check_branch
          %131 = sbr.rel (%p129) target = $region20
        $region19: #{tpu_custom_call.1} parent=11 // pred_region
          _
        $region20: #{tpu_custom_call.1} parent=11 // pred_fallthru
          _
      $region12: #{tpu_custom_call.1} parent=5 // pred_fallthru
        _
      %p132 = scmp.lt.s32.totalorder %s14, 6
      // Predicated region
      $region21: #{tpu_custom_call.1} parent=5 // pred_check
        %p133 = pneg %p132
      $region22: #{tpu_custom_call.1} parent=5 // pred_check_branch
        %135 = sbr.rel (%p133) target = $region24
      $region23: #{tpu_custom_call.1} parent=5 // pred_region
        // Predicated region
        $region25: #{tpu_custom_call.1} parent=23 // pred_check
          %p136 = pneg %p76
        $region26: #{tpu_custom_call.1} parent=23 // pred_check_branch
          %138 = sbr.rel (%p136) target = $region28
        $region27: #{tpu_custom_call.1} parent=23 // pred_region
          %s139 = sand.u32 %s66, 1
          %s140 = scalar_lea.sflag [#allocation8], %s139
          %s141 = sand.u32 %s66, 1
          %s142 = smul.addr %s141, 256
          %s143 = scalar_lea.vmem [#allocation7], %s142
          %s144 = smul.u32 8, %s14
          %s146 = ssub.s32 4096, 4096
          %147 = vsyncadd %s140, %s146
          %s148 = smul.addr %s144, 64
          %s149 = scalar_lea.hbm %s2, %s148
          %s150 = sshll.u32 %s143, 4
          %s151 = int_to_ptr.vmem [resolvable:$true] %s150
          %156 = dma.hbm_to_vmem [thread:$0]  %s149, 4096, %s151, %s140, 3072, 512, 32
        $region28: #{tpu_custom_call.1} parent=23 // pred_fallthru
          _
      $region24: #{tpu_custom_call.1} parent=5 // pred_fallthru
        _
      %p157 = scmp.le.s32.totalorder 1, %s14
      %p158 = scmp.lt.s32.totalorder %s14, 7
      %p159 = pnand %p157, %p158
      %p160 = pneg %p159
      // Predicated region
      $region29: #{tpu_custom_call.1} parent=5 // pred_check
        _
      $region30: #{tpu_custom_call.1} parent=5 // pred_check_branch
        %162 = sbr.rel (%p159) target = $region32
      $region31: #{tpu_custom_call.1} parent=5 // pred_region
        %s163 = ssub.s32 %s14, 1
        // Predicated region
        $region33: #{tpu_custom_call.1} parent=31 // pred_check
          %p164 = pneg %p35
        $region34: #{tpu_custom_call.1} parent=31 // pred_check_branch
          %166 = sbr.rel (%p164) target = $region36
        $region35: #{tpu_custom_call.1} parent=31 // pred_region
          %167 = dma.done [#allocation5], 32
        $region36: #{tpu_custom_call.1} parent=31 // pred_fallthru
          _
        %s168 = sand.u32 %s69, 1
        %s169 = scalar_lea.sflag [#allocation8], %s168
        %s170 = sand.u32 %s69, 1
        %s171 = smul.addr %s170, 256
        %s172 = scalar_lea.vmem [#allocation7], %s171
        // Predicated region
        $region37: #{tpu_custom_call.1} parent=31 // pred_check
          %p173 = pneg %p82
        $region38: #{tpu_custom_call.1} parent=31 // pred_check_branch
          %175 = sbr.rel (%p173) target = $region40
        $region39: #{tpu_custom_call.1} parent=31 // pred_region
          %176 = dma.done %s169, 4096
        $region40: #{tpu_custom_call.1} parent=31 // pred_fallthru
          _
        %p177 = pneg %p35
        %p178 = pneg %p32
        %p179 = pneg %p56
        %p180 = pneg %p53
        %s181 = sand.u32 %s69, 1
        %s182 = scalar_lea.sflag [#allocation8], %s181
        %s183 = sand.u32 %s69, 1
        %s184 = smul.addr %s183, 256
        %s185 = scalar_lea.vmem [#allocation7], %s184
        %p186 = pneg %p82
        %p187 = pneg %p79
        %p188 = pneg %p103
        %p189 = pneg %p100
        %s190 = smul.u32 8, %s19
        %p192 = scmp.eq.s32.totalorder %s19, 0
        // Predicated region
        $region41: #{tpu_custom_call.1} parent=31 // pred_check
          %p193 = pneg %p192
        $region42: #{tpu_custom_call.1} parent=31 // pred_check_branch
          %195 = sbr.rel (%p193) target = $region44
        $region43: #{tpu_custom_call.1} parent=31 // pred_region
          %v196 = vld [vmem:[#allocation4] sm:$0x3]
          %vm197 = vcmask 517120
          %v198 = vsel %vm197, %v196, 0.0
          %199 = vadd.xlane.f32.xlu0 %v198
          %v200 = vpop.xlane.xlu0 %199
          %v201 = vrcp.pop 64.0
          %v202 = vmul.f32 %v200, %v201
          %v203 = vsub.f32 %v196, %v202
          %v204 = vpack.c.bf16 %v203, %v203
          %vm205 = vcmask 516096
          %206 = vst.msk [vmem:[#allocation2] sm:$0x1] %vm205, %v204
        $region44: #{tpu_custom_call.1} parent=31 // pred_fallthru
          _
        %v207 = vld [vmem:[#allocation2] sm:$0x1]
        %v208 = vld [vmem:[%s172] sm:$0xff]
        %v209 = vld [vmem:[%s172 + $0x8] sm:$0xff]
        %v210 = vld [vmem:[%s172 + $0x10] sm:$0xff]
        %v211 = vld [vmem:[%s172 + $0x18] sm:$0xff]
        %v212 = vld [vmem:[%s172 + $0x20] sm:$0xff]
        %v213 = vld [vmem:[%s172 + $0x28] sm:$0xff]
        %v214 = vld [vmem:[%s172 + $0x30] sm:$0xff]
        %v215 = vld [vmem:[%s172 + $0x38] sm:$0xff]
        %v216 = vld [vmem:[%s172 + $0x40] sm:$0xff]
        %v217 = vld [vmem:[%s172 + $0x48] sm:$0xff]
        %v218 = vld [vmem:[%s172 + $0x50] sm:$0xff]
        %v219 = vld [vmem:[%s172 + $0x58] sm:$0xff]
        %v220 = vld [vmem:[%s172 + $0x60] sm:$0xff]
        %v221 = vld [vmem:[%s172 + $0x68] sm:$0xff]
        %v222 = vld [vmem:[%s172 + $0x70] sm:$0xff]
        %v223 = vld [vmem:[%s172 + $0x78] sm:$0xff]
        %v224 = vld [vmem:[%s172 + $0x80] sm:$0xff]
        %v225 = vld [vmem:[%s172 + $0x88] sm:$0xff]
        %v226 = vld [vmem:[%s172 + $0x90] sm:$0xff]
        %v227 = vld [vmem:[%s172 + $0x98] sm:$0xff]
        %v228 = vld [vmem:[%s172 + $0xa0] sm:$0xff]
        %v229 = vld [vmem:[%s172 + $0xa8] sm:$0xff]
        %v230 = vld [vmem:[%s172 + $0xb0] sm:$0xff]
        %v231 = vld [vmem:[%s172 + $0xb8] sm:$0xff]
        %v232 = vld [vmem:[%s172 + $0xc0] sm:$0xff]
        %v233 = vld [vmem:[%s172 + $0xc8] sm:$0xff]
        %v234 = vld [vmem:[%s172 + $0xd0] sm:$0xff]
        %v235 = vld [vmem:[%s172 + $0xd8] sm:$0xff]
        %v236 = vld [vmem:[%s172 + $0xe0] sm:$0xff]
        %v237 = vld [vmem:[%s172 + $0xe8] sm:$0xff]
        %v238 = vld [vmem:[%s172 + $0xf0] sm:$0xff]
        %v239 = vld [vmem:[%s172 + $0xf8] sm:$0xff]
        %v272 = vunpack.c.l.b16 %v208
        %v273 = vunpack.c.h.b16 %v208
        %v274 = vunpack.c.l.b16 %v209
        %v275 = vunpack.c.h.b16 %v209
        %v276 = vunpack.c.l.b16 %v210
        %v277 = vunpack.c.h.b16 %v210
        %v278 = vunpack.c.l.b16 %v211
        %v279 = vunpack.c.h.b16 %v211
        %v280 = vunpack.c.l.b16 %v212
        %v281 = vunpack.c.h.b16 %v212
        %v282 = vunpack.c.l.b16 %v213
        %v283 = vunpack.c.h.b16 %v213
        %v284 = vunpack.c.l.b16 %v214
        %v285 = vunpack.c.h.b16 %v214
        %v286 = vunpack.c.l.b16 %v215
        %v287 = vunpack.c.h.b16 %v215
        %v288 = vunpack.c.l.b16 %v216
        %v289 = vunpack.c.h.b16 %v216
        %v290 = vunpack.c.l.b16 %v217
        %v291 = vunpack.c.h.b16 %v217
        %v292 = vunpack.c.l.b16 %v218
        %v293 = vunpack.c.h.b16 %v218
        %v294 = vunpack.c.l.b16 %v219
        %v295 = vunpack.c.h.b16 %v219
        %v296 = vunpack.c.l.b16 %v220
        %v297 = vunpack.c.h.b16 %v220
        %v298 = vunpack.c.l.b16 %v221
        %v299 = vunpack.c.h.b16 %v221
        %v300 = vunpack.c.l.b16 %v222
        %v301 = vunpack.c.h.b16 %v222
        %v302 = vunpack.c.l.b16 %v223
        %v303 = vunpack.c.h.b16 %v223
        %v304 = vunpack.c.l.b16 %v224
        %v305 = vunpack.c.h.b16 %v224
        %v306 = vunpack.c.l.b16 %v225
        %v307 = vunpack.c.h.b16 %v225
        %v308 = vunpack.c.l.b16 %v226
        %v309 = vunpack.c.h.b16 %v226
        %v310 = vunpack.c.l.b16 %v227
        %v311 = vunpack.c.h.b16 %v227
        %v312 = vunpack.c.l.b16 %v228
        %v313 = vunpack.c.h.b16 %v228
        %v314 = vunpack.c.l.b16 %v229
        %v315 = vunpack.c.h.b16 %v229
        %v316 = vunpack.c.l.b16 %v230
        %v317 = vunpack.c.h.b16 %v230
        %v318 = vunpack.c.l.b16 %v231
        %v319 = vunpack.c.h.b16 %v231
        %v320 = vunpack.c.l.b16 %v232
        %v321 = vunpack.c.h.b16 %v232
        %v322 = vunpack.c.l.b16 %v233
        %v323 = vunpack.c.h.b16 %v233
        %v324 = vunpack.c.l.b16 %v234
        %v325 = vunpack.c.h.b16 %v234
        %v326 = vunpack.c.l.b16 %v235
        %v327 = vunpack.c.h.b16 %v235
        %v328 = vunpack.c.l.b16 %v236
        %v329 = vunpack.c.h.b16 %v236
        %v330 = vunpack.c.l.b16 %v237
        %v331 = vunpack.c.h.b16 %v237
        %v332 = vunpack.c.l.b16 %v238
        %v333 = vunpack.c.h.b16 %v238
        %v334 = vunpack.c.l.b16 %v239
        %v335 = vunpack.c.h.b16 %v239
        %v336 = vpack.c.b16 %v280, %v272
        %v337 = vpack.c.b16 %v281, %v273
        %v338 = vpack.c.b16 %v282, %v274
        %v339 = vpack.c.b16 %v283, %v275
        %v340 = vpack.c.b16 %v284, %v276
        %v341 = vpack.c.b16 %v285, %v277
        %v342 = vpack.c.b16 %v286, %v278
        %v343 = vpack.c.b16 %v287, %v279
        %v344 = vpack.c.b16 %v296, %v288
        %v345 = vpack.c.b16 %v297, %v289
        %v346 = vpack.c.b16 %v298, %v290
        %v347 = vpack.c.b16 %v299, %v291
        %v348 = vpack.c.b16 %v300, %v292
        %v349 = vpack.c.b16 %v301, %v293
        %v350 = vpack.c.b16 %v302, %v294
        %v351 = vpack.c.b16 %v303, %v295
        %v352 = vpack.c.b16 %v312, %v304
        %v353 = vpack.c.b16 %v313, %v305
        %v354 = vpack.c.b16 %v314, %v306
        %v355 = vpack.c.b16 %v315, %v307
        %v356 = vpack.c.b16 %v316, %v308
        %v357 = vpack.c.b16 %v317, %v309
        %v358 = vpack.c.b16 %v318, %v310
        %v359 = vpack.c.b16 %v319, %v311
        %v360 = vpack.c.b16 %v328, %v320
        %v361 = vpack.c.b16 %v329, %v321
        %v362 = vpack.c.b16 %v330, %v322
        %v363 = vpack.c.b16 %v331, %v323
        %v364 = vpack.c.b16 %v332, %v324
        %v365 = vpack.c.b16 %v333, %v325
        %v366 = vpack.c.b16 %v334, %v326
        %v367 = vpack.c.b16 %v335, %v327
        %vm400 = vcmask 523264
        %v402 = vsel %vm400, %v207, 0
        %404 = vmatprep.subr.bf16.mxu0 %v337
        %405 = vmatpush1.bf16.msra.mxu0 %v336
        %406 = vmatprep.subr.bf16.mxu0 %v345
        %407 = vmatpush1.bf16.msra.mxu0 %v344
        %408 = vmatprep.subr.bf16.mxu0 %v353
        %409 = vmatpush1.bf16.msra.mxu0 %v352
        %410 = vmatprep.subr.bf16.mxu0 %v361
        %411 = vmatpush1.bf16.msra.mxu0 %v360
        %412 = vmatprep.subr.bf16.mxu0 0
        %413 = vmatpush1.bf16.msra.mxu0 0
        %414 = vmatprep.subr.bf16.mxu0 0
        %415 = vmatpush1.bf16.msra.mxu0 0
        %416 = vmatprep.subr.bf16.mxu0 0
        %417 = vmatpush1.bf16.msra.mxu0 0
        %418 = vmatprep.subr.bf16.mxu0 0
        %419 = vmatpush1.bf16.msra.mxu0 0
        %420 = vmatprep.subr.bf16.mxu0 0
        %421 = vmatpush1.bf16.msra.mxu0 0
        %422 = vmatprep.subr.bf16.mxu0 0
        %423 = vmatpush1.bf16.msra.mxu0 0
        %424 = vmatprep.subr.bf16.mxu0 0
        %425 = vmatpush1.bf16.msra.mxu0 0
        %426 = vmatprep.subr.bf16.mxu0 0
        %427 = vmatpush1.bf16.msra.mxu0 0
        %428 = vmatprep.subr.bf16.mxu0 0
        %429 = vmatpush1.bf16.msra.mxu0 0
        %430 = vmatprep.subr.bf16.mxu0 0
        %431 = vmatpush1.bf16.msra.mxu0 0
        %432 = vmatprep.subr.bf16.mxu0 0
        %433 = vmatpush1.bf16.msra.mxu0 0
        %434 = vmatprep.subr.bf16.mxu0 0
        %435 = vmatpush1.bf16.msra.mxu0 0
        %436 = vmatprep.mubr.bf16.mxu0 0
        %437 = vmatmul.mubr.bf16.gmra.mrb[0].mxu0 %v402
        %v438 = vpop.f32.mrb[0].mxu0
        %v439 = vadd.f32 0.0, %v438
        %v440 = vpop.f32.mrb[0].mxu0
        %v441 = vadd.f32 0.0, %v440
        %v442 = vpop.f32.mrb[0].mxu0
        %v443 = vpop.f32.mrb[0].mxu0
        %444 = vdwg.mxu0
        %445 = vmatprep.subr.bf16.mxu0 %v339
        %446 = vmatpush1.bf16.msra.mxu0 %v338
        %447 = vmatprep.subr.bf16.mxu0 %v347
        %448 = vmatpush1.bf16.msra.mxu0 %v346
        %449 = vmatprep.subr.bf16.mxu0 %v355
        %450 = vmatpush1.bf16.msra.mxu0 %v354
        %451 = vmatprep.subr.bf16.mxu0 %v363
        %452 = vmatpush1.bf16.msra.mxu0 %v362
        %453 = vmatprep.subr.bf16.mxu0 0
        %454 = vmatpush1.bf16.msra.mxu0 0
        %455 = vmatprep.subr.bf16.mxu0 0
        %456 = vmatpush1.bf16.msra.mxu0 0
        %457 = vmatprep.subr.bf16.mxu0 0
        %458 = vmatpush1.bf16.msra.mxu0 0
        %459 = vmatprep.subr.bf16.mxu0 0
        %460 = vmatpush1.bf16.msra.mxu0 0
        %461 = vmatprep.subr.bf16.mxu0 0
        %462 = vmatpush1.bf16.msra.mxu0 0
        %463 = vmatprep.subr.bf16.mxu0 0
        %464 = vmatpush1.bf16.msra.mxu0 0
        %465 = vmatprep.subr.bf16.mxu0 0
        %466 = vmatpush1.bf16.msra.mxu0 0
        %467 = vmatprep.subr.bf16.mxu0 0
        %468 = vmatpush1.bf16.msra.mxu0 0
        %469 = vmatprep.subr.bf16.mxu0 0
        %470 = vmatpush1.bf16.msra.mxu0 0
        %471 = vmatprep.subr.bf16.mxu0 0
        %472 = vmatpush1.bf16.msra.mxu0 0
        %473 = vmatprep.subr.bf16.mxu0 0
        %474 = vmatpush1.bf16.msra.mxu0 0
        %475 = vmatprep.subr.bf16.mxu0 0
        %476 = vmatpush1.bf16.msra.mxu0 0
        %477 = vmatprep.mubr.bf16.mxu0 0
        %478 = vmatmul.mubr.bf16.gmra.mrb[0].mxu0 %v402
        %v479 = vpop.f32.mrb[0].mxu0
        %v480 = vadd.f32 0.0, %v479
        %v481 = vpop.f32.mrb[0].mxu0
        %v482 = vadd.f32 0.0, %v481
        %v483 = vpop.f32.mrb[0].mxu0
        %v484 = vpop.f32.mrb[0].mxu0
        %485 = vdwg.mxu0
        %486 = vmatprep.subr.bf16.mxu0 %v341
        %487 = vmatpush1.bf16.msra.mxu0 %v340
        %488 = vmatprep.subr.bf16.mxu0 %v349
        %489 = vmatpush1.bf16.msra.mxu0 %v348
        %490 = vmatprep.subr.bf16.mxu0 %v357
        %491 = vmatpush1.bf16.msra.mxu0 %v356
        %492 = vmatprep.subr.bf16.mxu0 %v365
        %493 = vmatpush1.bf16.msra.mxu0 %v364
        %494 = vmatprep.subr.bf16.mxu0 0
        %495 = vmatpush1.bf16.msra.mxu0 0
        %496 = vmatprep.subr.bf16.mxu0 0
        %497 = vmatpush1.bf16.msra.mxu0 0
        %498 = vmatprep.subr.bf16.mxu0 0
        %499 = vmatpush1.bf16.msra.mxu0 0
        %500 = vmatprep.subr.bf16.mxu0 0
        %501 = vmatpush1.bf16.msra.mxu0 0
        %502 = vmatprep.subr.bf16.mxu0 0
        %503 = vmatpush1.bf16.msra.mxu0 0
        %504 = vmatprep.subr.bf16.mxu0 0
        %505 = vmatpush1.bf16.msra.mxu0 0
        %506 = vmatprep.subr.bf16.mxu0 0
        %507 = vmatpush1.bf16.msra.mxu0 0
        %508 = vmatprep.subr.bf16.mxu0 0
        %509 = vmatpush1.bf16.msra.mxu0 0
        %510 = vmatprep.subr.bf16.mxu0 0
        %511 = vmatpush1.bf16.msra.mxu0 0
        %512 = vmatprep.subr.bf16.mxu0 0
        %513 = vmatpush1.bf16.msra.mxu0 0
        %514 = vmatprep.subr.bf16.mxu0 0
        %515 = vmatpush1.bf16.msra.mxu0 0
        %516 = vmatprep.subr.bf16.mxu0 0
        %517 = vmatpush1.bf16.msra.mxu0 0
        %518 = vmatprep.mubr.bf16.mxu0 0
        %519 = vmatmul.mubr.bf16.gmra.mrb[0].mxu0 %v402
        %v520 = vpop.f32.mrb[0].mxu0
        %v521 = vadd.f32 0.0, %v520
        %v522 = vpop.f32.mrb[0].mxu0
        %v523 = vadd.f32 0.0, %v522
        %v524 = vpop.f32.mrb[0].mxu0
        %v525 = vpop.f32.mrb[0].mxu0
        %526 = vdwg.mxu0
        %527 = vmatprep.subr.bf16.mxu0 %v343
        %528 = vmatpush1.bf16.msra.mxu0 %v342
        %529 = vmatprep.subr.bf16.mxu0 %v351
        %530 = vmatpush1.bf16.msra.mxu0 %v350
        %531 = vmatprep.subr.bf16.mxu0 %v359
        %532 = vmatpush1.bf16.msra.mxu0 %v358
        %533 = vmatprep.subr.bf16.mxu0 %v367
        %534 = vmatpush1.bf16.msra.mxu0 %v366
        %535 = vmatprep.subr.bf16.mxu0 0
        %536 = vmatpush1.bf16.msra.mxu0 0
        %537 = vmatprep.subr.bf16.mxu0 0
        %538 = vmatpush1.bf16.msra.mxu0 0
        %539 = vmatprep.subr.bf16.mxu0 0
        %540 = vmatpush1.bf16.msra.mxu0 0
        %541 = vmatprep.subr.bf16.mxu0 0
        %542 = vmatpush1.bf16.msra.mxu0 0
        %543 = vmatprep.subr.bf16.mxu0 0
        %544 = vmatpush1.bf16.msra.mxu0 0
        %545 = vmatprep.subr.bf16.mxu0 0
        %546 = vmatpush1.bf16.msra.mxu0 0
        %547 = vmatprep.subr.bf16.mxu0 0
        %548 = vmatpush1.bf16.msra.mxu0 0
        %549 = vmatprep.subr.bf16.mxu0 0
        %550 = vmatpush1.bf16.msra.mxu0 0
        %551 = vmatprep.subr.bf16.mxu0 0
        %552 = vmatpush1.bf16.msra.mxu0 0
        %553 = vmatprep.subr.bf16.mxu0 0
        %554 = vmatpush1.bf16.msra.mxu0 0
        %555 = vmatprep.subr.bf16.mxu0 0
        %556 = vmatpush1.bf16.msra.mxu0 0
        %557 = vmatprep.subr.bf16.mxu0 0
        %558 = vmatpush1.bf16.msra.mxu0 0
        %559 = vmatprep.mubr.bf16.mxu0 0
        %560 = vmatmul.mubr.bf16.gmra.mrb[0].mxu0 %v402
        %v561 = vpop.f32.mrb[0].mxu0
        %v562 = vadd.f32 0.0, %v561
        %v563 = vpop.f32.mrb[0].mxu0
        %v564 = vadd.f32 0.0, %v563
        %v565 = vpop.f32.mrb[0].mxu0
        %v566 = vpop.f32.mrb[0].mxu0
        %567 = vdwg.mxu0
        %v568 = vmul.f32 %v439, %v439
        %v569 = vmul.f32 %v441, %v441
        %v570 = vmul.f32 %v480, %v480
        %v571 = vmul.f32 %v482, %v482
        %v572 = vmul.f32 %v521, %v521
        %v573 = vmul.f32 %v523, %v523
        %v574 = vmul.f32 %v562, %v562
        %v575 = vmul.f32 %v564, %v564
        %v576 = vadd.f32 %v568, %v572
        %v577 = vadd.f32 %v569, %v573
        %v578 = vadd.f32 %v570, %v574
        %v579 = vadd.f32 %v571, %v575
        %v584 = vcombine.low %v576, %v577
        %v585 = vcombine.low %v578, %v579
        %v587 = vunpack.c.l.s4 1983009808
        %v588 = vunpack.c.0.s8 %v587
        %v589 = vlaneseq
        %v590 = vshrl.u32 %v589, 7
        %v591 = vsub.s32 %v588, %v590
        %v592 = vrot.slane %v584, %v591
        %v594 = vunpack.c.l.s4 1983009808
        %v595 = vunpack.c.0.s8 %v594
        %v596 = vlaneseq
        %v597 = vshrl.u32 %v596, 7
        %v598 = vsub.s32 %v595, %v597
        %v599 = vrot.slane %v585, %v598
        %v600 = vcombine.low %v592, %v599
        %s602 = smul.u32 %s19, 4
        %s603 = smul.addr %s602, 2
        %s604 = scalar_lea.vmem [#allocation3], %s603
        %605 = vst [vmem:[%s604] sm:$0xff] %v600
        %p606 = scmp.eq.s32.totalorder %s19, 5
        // Predicated region
        $region45: #{tpu_custom_call.1} parent=31 // pred_check
          %p607 = pneg %p606
        $region46: #{tpu_custom_call.1} parent=31 // pred_check_branch
          %609 = sbr.rel (%p607) target = $region48
        $region47: #{tpu_custom_call.1} parent=31 // pred_region
          %v610 = vld [vmem:[#allocation4] sm:$0x3]
          %v611 = vld [vmem:[%s1] sm:$0x3]
          %v612 = vsub.f32 %v610, %v611
          %v613 = vand.u32 2147483647, %v612
          %vm614 = vcmask 517120
          %v615 = vsel %vm614, %v613, 0.0
          %616 = vadd.xlane.f32.xlu0 %v615
          %v617 = vpop.xlane.xlu0 %616
          %v618 = vrot.slane %v617, 4
          %v619 = vadd.f32 %v617, %v618
          %v620 = vrot.slane %v619, 2
          %v621 = vadd.f32 %v619, %v620
          %v622 = vrot.slane %v621, 1
          %v623 = vadd.f32 %v621, %v622
          %s624 = vtos %v623
          %v625 = vrcp.pop 128.0
          %s626 = vtos %v625
          %s627 = smul.f32 %s624, %s626
          %v628 = vsel %vm614, %v610, 0.0
          %629 = vadd.xlane.f32.xlu0 %v628
          %v630 = vpop.xlane.xlu0 %629
          %v631 = vsel %vm614, %v611, 0.0
          %632 = vadd.xlane.f32.xlu0 %v631
          %v633 = vpop.xlane.xlu0 %632
          %v634 = vmul.f32 %v610, %v611
          %v635 = vsel %vm614, %v634, 0.0
          %636 = vadd.xlane.f32.xlu0 %v635
          %v637 = vpop.xlane.xlu0 %636
          %v638 = vmul.f32 %v610, %v610
          %v639 = vsel %vm614, %v638, 0.0
          %640 = vadd.xlane.f32.xlu0 %v639
          %v641 = vpop.xlane.xlu0 %640
          %v642 = vmul.f32 %v611, %v611
          %v643 = vsel %vm614, %v642, 0.0
          %644 = vadd.xlane.f32.xlu0 %v643
          %v645 = vpop.xlane.xlu0 %644
          %v646 = vmul.f32 %v641, 64.0
          %v647 = vmul.f32 %v630, %v630
          %v648 = vsub.f32 %v646, %v647
          %v649 = vmul.f32 %v645, 64.0
          %v650 = vmul.f32 %v633, %v633
          %v651 = vsub.f32 %v649, %v650
          %v652 = vmul.f32 %v648, %v651
          %v653 = vrsqrt.pop %v652
          %v654 = vmul.f32 %v652, %v653
          %vm655 = vcmp.eq.f32.partialorder %v652, inf
          %v656 = vsel %vm655, %v652, %v654
          %vm657 = vcmp.eq.f32.partialorder %v652, 0.0
          %v658 = vand.u32 %v652, 2147483648
          %v659 = vsel %vm657, %v658, %v656
          %v660 = vmul.f32 %v637, 64.0
          %v661 = vmul.f32 %v630, %v633
          %v662 = vsub.f32 %v660, %v661
          %v663 = vrcp.pop %v659
          %v664 = vmul.f32 %v662, %v663
          %v665 = vsub.f32 1.0, %v664
          %vm666 = vcmask 1024
          %v667 = vsel %vm666, %v665, 0.0
          %668 = vadd.xlane.f32.xlu0 %v667
          %v669 = vpop.xlane.xlu0 %668
          %v670 = vrot.slane %v669, 4
          %v671 = vadd.f32 %v669, %v670
          %v672 = vrot.slane %v671, 2
          %v673 = vadd.f32 %v671, %v672
          %v674 = vrot.slane %v673, 1
          %v675 = vadd.f32 %v673, %v674
          %s676 = vtos %v675
          %v677 = vrcp.pop 2.0
          %s678 = vtos %v677
          %s679 = smul.f32 %s676, %s678
          %v680 = vld [vmem:[#allocation3] sm:$0xff]
          %v681 = vld [vmem:[#allocation3 + $0x8] sm:$0xff]
          %v682 = vld [vmem:[#allocation3 + $0x10] sm:$0xff]
          %v683 = vld [vmem:[#allocation3 + $0x18] sm:$0xff]
          %v684 = vld [vmem:[#allocation3 + $0x20] sm:$0xff]
          %v685 = vld [vmem:[#allocation3 + $0x28] sm:$0xff]
          %v686 = vlaneseq
          %v687 = vand.u32 %v686, 127
          %v688 = vadd.s32 %v687, 128
          %v689 = vadd.s32 %v687, 256
          %v690 = vadd.s32 %v687, 384
          %v691 = vadd.s32 %v687, 512
          %v692 = vadd.s32 %v688, 512
          %v693 = vadd.s32 %v689, 512
          %v694 = vadd.s32 %v690, 512
          %v695 = vadd.s32 %v687, 1024
          %v696 = vadd.s32 %v688, 1024
          %v697 = vadd.s32 %v689, 1024
          %v698 = vadd.s32 %v690, 1024
          %v699 = vadd.s32 %v687, 1536
          %v700 = vadd.s32 %v688, 1536
          %v701 = vadd.s32 %v689, 1536
          %v702 = vadd.s32 %v690, 1536
          %v703 = vadd.s32 %v687, 2048
          %v704 = vadd.s32 %v688, 2048
          %v705 = vadd.s32 %v689, 2048
          %v706 = vadd.s32 %v690, 2048
          %v707 = vadd.s32 %v687, 2560
          %v708 = vadd.s32 %v688, 2560
          %v709 = vadd.s32 %v689, 2560
          %v710 = vadd.s32 %v690, 2560
          %vm711 = vcmp.lt.s32.totalorder %v687, 2701
          %vm712 = vcmp.lt.s32.totalorder %v688, 2701
          %vm713 = vcmp.lt.s32.totalorder %v689, 2701
          %vm714 = vcmp.lt.s32.totalorder %v690, 2701
          %vm715 = vcmp.lt.s32.totalorder %v691, 2701
          %vm716 = vcmp.lt.s32.totalorder %v692, 2701
          %vm717 = vcmp.lt.s32.totalorder %v693, 2701
          %vm718 = vcmp.lt.s32.totalorder %v694, 2701
          %vm719 = vcmp.lt.s32.totalorder %v695, 2701
          %vm720 = vcmp.lt.s32.totalorder %v696, 2701
          %vm721 = vcmp.lt.s32.totalorder %v697, 2701
          %vm722 = vcmp.lt.s32.totalorder %v698, 2701
          %vm723 = vcmp.lt.s32.totalorder %v699, 2701
          %vm724 = vcmp.lt.s32.totalorder %v700, 2701
          %vm725 = vcmp.lt.s32.totalorder %v701, 2701
          %vm726 = vcmp.lt.s32.totalorder %v702, 2701
          %vm727 = vcmp.lt.s32.totalorder %v703, 2701
          %vm728 = vcmp.lt.s32.totalorder %v704, 2701
          %vm729 = vcmp.lt.s32.totalorder %v705, 2701
          %vm730 = vcmp.lt.s32.totalorder %v706, 2701
          %vm731 = vcmp.lt.s32.totalorder %v707, 2701
          %vm732 = vcmp.lt.s32.totalorder %v708, 2701
          %vm733 = vcmp.lt.s32.totalorder %v709, 2701
          %vm734 = vcmp.lt.s32.totalorder %v710, 2701
          %v735 = vcvt.s32.f32 %v687
          %v736 = vcvt.s32.f32 %v688
          %v737 = vcvt.s32.f32 %v689
          %v738 = vcvt.s32.f32 %v690
          %v739 = vcvt.s32.f32 %v691
          %v740 = vcvt.s32.f32 %v692
          %v741 = vcvt.s32.f32 %v693
          %v742 = vcvt.s32.f32 %v694
          %v743 = vcvt.s32.f32 %v695
          %v744 = vcvt.s32.f32 %v696
          %v745 = vcvt.s32.f32 %v697
          %v746 = vcvt.s32.f32 %v698
          %v747 = vcvt.s32.f32 %v699
          %v748 = vcvt.s32.f32 %v700
          %v749 = vcvt.s32.f32 %v701
          %v750 = vcvt.s32.f32 %v702
          %v751 = vcvt.s32.f32 %v703
          %v752 = vcvt.s32.f32 %v704
          %v753 = vcvt.s32.f32 %v705
          %v754 = vcvt.s32.f32 %v706
          %v755 = vcvt.s32.f32 %v707
          %v756 = vcvt.s32.f32 %v708
          %v757 = vcvt.s32.f32 %v709
          %v758 = vcvt.s32.f32 %v710
          %v759 = vmul.f32 %v735, 0.005554527
          %v760 = vmul.f32 %v736, 0.005554527
          %v761 = vmul.f32 %v737, 0.005554527
          %v762 = vmul.f32 %v738, 0.005554527
          %v763 = vmul.f32 %v739, 0.005554527
          %v764 = vmul.f32 %v740, 0.005554527
          %v765 = vmul.f32 %v741, 0.005554527
          %v766 = vmul.f32 %v742, 0.005554527
          %v767 = vmul.f32 %v743, 0.005554527
          %v768 = vmul.f32 %v744, 0.005554527
          %v769 = vmul.f32 %v745, 0.005554527
          %v770 = vmul.f32 %v746, 0.005554527
          %v771 = vmul.f32 %v747, 0.005554527
          %v772 = vmul.f32 %v748, 0.005554527
          %v773 = vmul.f32 %v749, 0.005554527
          %v774 = vmul.f32 %v750, 0.005554527
          %v775 = vmul.f32 %v751, 0.005554527
          %v776 = vmul.f32 %v752, 0.005554527
          %v777 = vmul.f32 %v753, 0.005554527
          %v778 = vmul.f32 %v754, 0.005554527
          %v779 = vmul.f32 %v755, 0.005554527
          %v780 = vmul.f32 %v756, 0.005554527
          %v781 = vmul.f32 %v757, 0.005554527
          %v782 = vmul.f32 %v758, 0.005554527
          %v783 = vsel %vm711, %v759, 1e+09
          %v784 = vsel %vm712, %v760, 1e+09
          %v785 = vsel %vm713, %v761, 1e+09
          %v786 = vsel %vm714, %v762, 1e+09
          %v787 = vsel %vm715, %v763, 1e+09
          %v788 = vsel %vm716, %v764, 1e+09
          %v789 = vsel %vm717, %v765, 1e+09
          %v790 = vsel %vm718, %v766, 1e+09
          %v791 = vsel %vm719, %v767, 1e+09
          %v792 = vsel %vm720, %v768, 1e+09
          %v793 = vsel %vm721, %v769, 1e+09
          %v794 = vsel %vm722, %v770, 1e+09
          %v795 = vsel %vm723, %v771, 1e+09
          %v796 = vsel %vm724, %v772, 1e+09
          %v797 = vsel %vm725, %v773, 1e+09
          %v798 = vsel %vm726, %v774, 1e+09
          %v799 = vsel %vm727, %v775, 1e+09
          %v800 = vsel %vm728, %v776, 1e+09
          %v801 = vsel %vm729, %v777, 1e+09
          %v802 = vsel %vm730, %v778, 1e+09
          %v803 = vsel %vm731, %v779, 1e+09
          %v804 = vsel %vm732, %v780, 1e+09
          %v805 = vsel %vm733, %v781, 1e+09
          %v806 = vsel %vm734, %v782, 1e+09
          %v813 = vcombine.high %v680, %v680
          %v815 = vunpack.c.l.s4 1983009808
          %v816 = vunpack.c.0.s8 %v815
          %v817 = vlaneseq
          %v818 = vshrl.u32 %v817, 7
          %v819 = vsub.s32 %v816, %v818
          %v820 = vrot.slane %v680, %v819
          %v822 = vunpack.c.l.s4 1983009808
          %v823 = vunpack.c.0.s8 %v822
          %v824 = vlaneseq
          %v825 = vshrl.u32 %v824, 7
          %v826 = vsub.s32 %v823, %v825
          %v827 = vrot.slane %v813, %v826
          %v828 = vcombine.high %v820, %v820
          %v829 = vcombine.high %v827, %v827
          %v830 = vcombine.high %v681, %v681
          %v832 = vunpack.c.l.s4 1983009808
          %v833 = vunpack.c.0.s8 %v832
          %v834 = vlaneseq
          %v835 = vshrl.u32 %v834, 7
          %v836 = vsub.s32 %v833, %v835
          %v837 = vrot.slane %v681, %v836
          %v839 = vunpack.c.l.s4 1983009808
          %v840 = vunpack.c.0.s8 %v839
          %v841 = vlaneseq
          %v842 = vshrl.u32 %v841, 7
          %v843 = vsub.s32 %v840, %v842
          %v844 = vrot.slane %v830, %v843
          %v845 = vcombine.high %v837, %v837
          %v846 = vcombine.high %v844, %v844
          %v847 = vcombine.high %v682, %v682
          %v849 = vunpack.c.l.s4 1983009808
          %v850 = vunpack.c.0.s8 %v849
          %v851 = vlaneseq
          %v852 = vshrl.u32 %v851, 7
          %v853 = vsub.s32 %v850, %v852
          %v854 = vrot.slane %v682, %v853
          %v856 = vunpack.c.l.s4 1983009808
          %v857 = vunpack.c.0.s8 %v856
          %v858 = vlaneseq
          %v859 = vshrl.u32 %v858, 7
          %v860 = vsub.s32 %v857, %v859
          %v861 = vrot.slane %v847, %v860
          %v862 = vcombine.high %v854, %v854
          %v863 = vcombine.high %v861, %v861
          %v864 = vcombine.high %v683, %v683
          %v866 = vunpack.c.l.s4 1983009808
          %v867 = vunpack.c.0.s8 %v866
          %v868 = vlaneseq
          %v869 = vshrl.u32 %v868, 7
          %v870 = vsub.s32 %v867, %v869
          %v871 = vrot.slane %v683, %v870
          %v873 = vunpack.c.l.s4 1983009808
          %v874 = vunpack.c.0.s8 %v873
          %v875 = vlaneseq
          %v876 = vshrl.u32 %v875, 7
          %v877 = vsub.s32 %v874, %v876
          %v878 = vrot.slane %v864, %v877
          %v879 = vcombine.high %v871, %v871
          %v880 = vcombine.high %v878, %v878
          %v881 = vcombine.high %v684, %v684
          %v883 = vunpack.c.l.s4 1983009808
          %v884 = vunpack.c.0.s8 %v883
          %v885 = vlaneseq
          %v886 = vshrl.u32 %v885, 7
          %v887 = vsub.s32 %v884, %v886
          %v888 = vrot.slane %v684, %v887
          %v890 = vunpack.c.l.s4 1983009808
          %v891 = vunpack.c.0.s8 %v890
          %v892 = vlaneseq
          %v893 = vshrl.u32 %v892, 7
          %v894 = vsub.s32 %v891, %v893
          %v895 = vrot.slane %v881, %v894
          %v896 = vcombine.high %v888, %v888
          %v897 = vcombine.high %v895, %v895
          %v898 = vcombine.high %v685, %v685
          %v900 = vunpack.c.l.s4 1983009808
          %v901 = vunpack.c.0.s8 %v900
          %v902 = vlaneseq
          %v903 = vshrl.u32 %v902, 7
          %v904 = vsub.s32 %v901, %v903
          %v905 = vrot.slane %v685, %v904
          %v907 = vunpack.c.l.s4 1983009808
          %v908 = vunpack.c.0.s8 %v907
          %v909 = vlaneseq
          %v910 = vshrl.u32 %v909, 7
          %v911 = vsub.s32 %v908, %v910
          %v912 = vrot.slane %v898, %v911
          %v913 = vcombine.high %v905, %v905
          %v914 = vcombine.high %v912, %v912
          %vm939 = vcmask 1041408
          %v940 = vsel %vm939, %v820, 0.0
          %v941 = vsel %vm939, %v828, 0.0
          %v942 = vadd.f32 %v940, %v941
          %v943 = vsel %vm939, %v827, 0.0
          %v944 = vadd.f32 %v942, %v943
          %v945 = vsel %vm939, %v829, 0.0
          %v946 = vadd.f32 %v944, %v945
          %947 = vadd.xlane.f32.xlu0 %v946
          %v948 = vpop.xlane.xlu0 %947
          %v949 = vsel %vm939, %v837, 0.0
          %v950 = vsel %vm939, %v845, 0.0
          %v951 = vadd.f32 %v949, %v950
          %v952 = vsel %vm939, %v844, 0.0
          %v953 = vadd.f32 %v951, %v952
          %v954 = vsel %vm939, %v846, 0.0
          %v955 = vadd.f32 %v953, %v954
          %956 = vadd.xlane.f32.xlu0 %v955
          %v957 = vpop.xlane.xlu0 %956
          %v958 = vsel %vm939, %v854, 0.0
          %v959 = vsel %vm939, %v862, 0.0
          %v960 = vadd.f32 %v958, %v959
          %v961 = vsel %vm939, %v861, 0.0
          %v962 = vadd.f32 %v960, %v961
          %v963 = vsel %vm939, %v863, 0.0
          %v964 = vadd.f32 %v962, %v963
          %965 = vadd.xlane.f32.xlu0 %v964
          %v966 = vpop.xlane.xlu0 %965
          %v967 = vsel %vm939, %v871, 0.0
          %v968 = vsel %vm939, %v879, 0.0
          %v969 = vadd.f32 %v967, %v968
          %v970 = vsel %vm939, %v878, 0.0
          %v971 = vadd.f32 %v969, %v970
          %v972 = vsel %vm939, %v880, 0.0
          %v973 = vadd.f32 %v971, %v972
          %974 = vadd.xlane.f32.xlu0 %v973
          %v975 = vpop.xlane.xlu0 %974
          %v976 = vsel %vm939, %v888, 0.0
          %v977 = vsel %vm939, %v896, 0.0
          %v978 = vadd.f32 %v976, %v977
          %v979 = vsel %vm939, %v895, 0.0
          %v980 = vadd.f32 %v978, %v979
          %v981 = vsel %vm939, %v897, 0.0
          %v982 = vadd.f32 %v980, %v981
          %983 = vadd.xlane.f32.xlu0 %v982
          %v984 = vpop.xlane.xlu0 %983
          %v985 = vsel %vm939, %v905, 0.0
          %v986 = vsel %vm939, %v913, 0.0
          %v987 = vadd.f32 %v985, %v986
          %v988 = vsel %vm939, %v912, 0.0
          %v989 = vadd.f32 %v987, %v988
          %v990 = vsel %vm939, %v914, 0.0
          %v991 = vadd.f32 %v989, %v990
          %992 = vadd.xlane.f32.xlu0 %v991
          %v993 = vpop.xlane.xlu0 %992
          %v994 = vsel %vm939, %v948, 0.0
          %v995 = vsel %vm939, %v957, 0.0
          %v996 = vadd.f32 %v994, %v995
          %v997 = vsel %vm939, %v966, 0.0
          %v998 = vadd.f32 %v996, %v997
          %v999 = vsel %vm939, %v975, 0.0
          %v1000 = vadd.f32 %v998, %v999
          %v1001 = vsel %vm939, %v984, 0.0
          %v1002 = vadd.f32 %v1000, %v1001
          %v1003 = vsel %vm939, %v993, 0.0
          %v1004 = vadd.f32 %v1002, %v1003
          %vm1005 = vcmp.ge.f32.partialorder %v783, 0.6666667
          %vm1006 = vcmp.ge.f32.partialorder %v784, 0.6666667
          %vm1007 = vcmp.ge.f32.partialorder %v785, 0.6666667
          %vm1008 = vcmp.ge.f32.partialorder %v786, 0.6666667
          %vm1009 = vcmp.ge.f32.partialorder %v787, 0.6666667
          %vm1010 = vcmp.ge.f32.partialorder %v788, 0.6666667
          %vm1011 = vcmp.ge.f32.partialorder %v789, 0.6666667
          %vm1012 = vcmp.ge.f32.partialorder %v790, 0.6666667
          %vm1013 = vcmp.ge.f32.partialorder %v791, 0.6666667
          %vm1014 = vcmp.ge.f32.partialorder %v792, 0.6666667
          %vm1015 = vcmp.ge.f32.partialorder %v793, 0.6666667
          %vm1016 = vcmp.ge.f32.partialorder %v794, 0.6666667
          %vm1017 = vcmp.ge.f32.partialorder %v795, 0.6666667
          %vm1018 = vcmp.ge.f32.partialorder %v796, 0.6666667
          %vm1019 = vcmp.ge.f32.partialorder %v797, 0.6666667
          %vm1020 = vcmp.ge.f32.partialorder %v798, 0.6666667
          %vm1021 = vcmp.ge.f32.partialorder %v799, 0.6666667
          %vm1022 = vcmp.ge.f32.partialorder %v800, 0.6666667
          %vm1023 = vcmp.ge.f32.partialorder %v801, 0.6666667
          %vm1024 = vcmp.ge.f32.partialorder %v802, 0.6666667
          %vm1025 = vcmp.ge.f32.partialorder %v803, 0.6666667
          %vm1026 = vcmp.ge.f32.partialorder %v804, 0.6666667
          %vm1027 = vcmp.ge.f32.partialorder %v805, 0.6666667
          %vm1028 = vcmp.ge.f32.partialorder %v806, 0.6666667
          %vm1029 = vcmp.le.f32.partialorder %v783, 3.0
          %vm1030 = vcmp.le.f32.partialorder %v784, 3.0
          %vm1031 = vcmp.le.f32.partialorder %v785, 3.0
          %vm1032 = vcmp.le.f32.partialorder %v786, 3.0
          %vm1033 = vcmp.le.f32.partialorder %v787, 3.0
          %vm1034 = vcmp.le.f32.partialorder %v788, 3.0
          %vm1035 = vcmp.le.f32.partialorder %v789, 3.0
          %vm1036 = vcmp.le.f32.partialorder %v790, 3.0
          %vm1037 = vcmp.le.f32.partialorder %v791, 3.0
          %vm1038 = vcmp.le.f32.partialorder %v792, 3.0
          %vm1039 = vcmp.le.f32.partialorder %v793, 3.0
          %vm1040 = vcmp.le.f32.partialorder %v794, 3.0
          %vm1041 = vcmp.le.f32.partialorder %v795, 3.0
          %vm1042 = vcmp.le.f32.partialorder %v796, 3.0
          %vm1043 = vcmp.le.f32.partialorder %v797, 3.0
          %vm1044 = vcmp.le.f32.partialorder %v798, 3.0
          %vm1045 = vcmp.le.f32.partialorder %v799, 3.0
          %vm1046 = vcmp.le.f32.partialorder %v800, 3.0
          %vm1047 = vcmp.le.f32.partialorder %v801, 3.0
          %vm1048 = vcmp.le.f32.partialorder %v802, 3.0
          %vm1049 = vcmp.le.f32.partialorder %v803, 3.0
          %vm1050 = vcmp.le.f32.partialorder %v804, 3.0
          %vm1051 = vcmp.le.f32.partialorder %v805, 3.0
          %vm1052 = vcmp.le.f32.partialorder %v806, 3.0
          %vm1053 = vmand %vm1005, %vm1029
          %vm1054 = vmand %vm1006, %vm1030
          %vm1055 = vmand %vm1007, %vm1031
          %vm1056 = vmand %vm1008, %vm1032
          %vm1057 = vmand %vm1009, %vm1033
          %vm1058 = vmand %vm1010, %vm1034
          %vm1059 = vmand %vm1011, %vm1035
          %vm1060 = vmand %vm1012, %vm1036
          %vm1061 = vmand %vm1013, %vm1037
          %vm1062 = vmand %vm1014, %vm1038
          %vm1063 = vmand %vm1015, %vm1039
          %vm1064 = vmand %vm1016, %vm1040
          %vm1065 = vmand %vm1017, %vm1041
          %vm1066 = vmand %vm1018, %vm1042
          %vm1067 = vmand %vm1019, %vm1043
          %vm1068 = vmand %vm1020, %vm1044
          %vm1069 = vmand %vm1021, %vm1045
          %vm1070 = vmand %vm1022, %vm1046
          %vm1071 = vmand %vm1023, %vm1047
          %vm1072 = vmand %vm1024, %vm1048
          %vm1073 = vmand %vm1025, %vm1049
          %vm1074 = vmand %vm1026, %vm1050
          %vm1075 = vmand %vm1027, %vm1051
          %vm1076 = vmand %vm1028, %vm1052
          %v1077 = vsel %vm1053, 1, 0
          %v1078 = vsel %vm1054, 1, 0
          %v1079 = vsel %vm1055, 1, 0
          %v1080 = vsel %vm1056, 1, 0
          %v1081 = vsel %vm1057, 1, 0
          %v1082 = vsel %vm1058, 1, 0
          %v1083 = vsel %vm1059, 1, 0
          %v1084 = vsel %vm1060, 1, 0
          %v1085 = vsel %vm1061, 1, 0
          %v1086 = vsel %vm1062, 1, 0
          %v1087 = vsel %vm1063, 1, 0
          %v1088 = vsel %vm1064, 1, 0
          %v1089 = vsel %vm1065, 1, 0
          %v1090 = vsel %vm1066, 1, 0
          %v1091 = vsel %vm1067, 1, 0
          %v1092 = vsel %vm1068, 1, 0
          %v1093 = vsel %vm1069, 1, 0
          %v1094 = vsel %vm1070, 1, 0
          %v1095 = vsel %vm1071, 1, 0
          %v1096 = vsel %vm1072, 1, 0
          %v1097 = vsel %vm1073, 1, 0
          %v1098 = vsel %vm1074, 1, 0
          %v1099 = vsel %vm1075, 1, 0
          %v1100 = vsel %vm1076, 1, 0
          %vm1101 = vcmp.eq.s32.totalorder %v1077, 1
          %vm1102 = vcmp.eq.s32.totalorder %v1078, 1
          %vm1103 = vcmp.eq.s32.totalorder %v1079, 1
          %vm1104 = vcmp.eq.s32.totalorder %v1080, 1
          %vm1105 = vcmp.eq.s32.totalorder %v1081, 1
          %vm1106 = vcmp.eq.s32.totalorder %v1082, 1
          %vm1107 = vcmp.eq.s32.totalorder %v1083, 1
          %vm1108 = vcmp.eq.s32.totalorder %v1084, 1
          %vm1109 = vcmp.eq.s32.totalorder %v1085, 1
          %vm1110 = vcmp.eq.s32.totalorder %v1086, 1
          %vm1111 = vcmp.eq.s32.totalorder %v1087, 1
          %vm1112 = vcmp.eq.s32.totalorder %v1088, 1
          %vm1113 = vcmp.eq.s32.totalorder %v1089, 1
          %vm1114 = vcmp.eq.s32.totalorder %v1090, 1
          %vm1115 = vcmp.eq.s32.totalorder %v1091, 1
          %vm1116 = vcmp.eq.s32.totalorder %v1092, 1
          %vm1117 = vcmp.eq.s32.totalorder %v1093, 1
          %vm1118 = vcmp.eq.s32.totalorder %v1094, 1
          %vm1119 = vcmp.eq.s32.totalorder %v1095, 1
          %vm1120 = vcmp.eq.s32.totalorder %v1096, 1
          %vm1121 = vcmp.eq.s32.totalorder %v1097, 1
          %vm1122 = vcmp.eq.s32.totalorder %v1098, 1
          %vm1123 = vcmp.eq.s32.totalorder %v1099, 1
          %vm1124 = vcmp.eq.s32.totalorder %v1100, 1
          %v1125 = vsel %vm1101, %v820, 0.0
          %v1126 = vsel %vm1102, %v828, 0.0
          %v1127 = vsel %vm1103, %v827, 0.0
          %v1128 = vsel %vm1104, %v829, 0.0
          %v1129 = vsel %vm1105, %v837, 0.0
          %v1130 = vsel %vm1106, %v845, 0.0
          %v1131 = vsel %vm1107, %v844, 0.0
          %v1132 = vsel %vm1108, %v846, 0.0
          %v1133 = vsel %vm1109, %v854, 0.0
          %v1134 = vsel %vm1110, %v862, 0.0
          %v1135 = vsel %vm1111, %v861, 0.0
          %v1136 = vsel %vm1112, %v863, 0.0
          %v1137 = vsel %vm1113, %v871, 0.0
          %v1138 = vsel %vm1114, %v879, 0.0
          %v1139 = vsel %vm1115, %v878, 0.0
          %v1140 = vsel %vm1116, %v880, 0.0
          %v1141 = vsel %vm1117, %v888, 0.0
          %v1142 = vsel %vm1118, %v896, 0.0
          %v1143 = vsel %vm1119, %v895, 0.0
          %v1144 = vsel %vm1120, %v897, 0.0
          %v1145 = vsel %vm1121, %v905, 0.0
          %v1146 = vsel %vm1122, %v913, 0.0
          %v1147 = vsel %vm1123, %v912, 0.0
          %v1148 = vsel %vm1124, %v914, 0.0
          %v1149 = vsel %vm939, %v1125, 0.0
          %v1150 = vsel %vm939, %v1126, 0.0
          %v1151 = vadd.f32 %v1149, %v1150
          %v1152 = vsel %vm939, %v1127, 0.0
          %v1153 = vadd.f32 %v1151, %v1152
          %v1154 = vsel %vm939, %v1128, 0.0
          %v1155 = vadd.f32 %v1153, %v1154
          %1156 = vadd.xlane.f32.xlu0 %v1155
          %v1157 = vpop.xlane.xlu0 %1156
          %v1158 = vsel %vm939, %v1129, 0.0
          %v1159 = vsel %vm939, %v1130, 0.0
          %v1160 = vadd.f32 %v1158, %v1159
          %v1161 = vsel %vm939, %v1131, 0.0
          %v1162 = vadd.f32 %v1160, %v1161
          %v1163 = vsel %vm939, %v1132, 0.0
          %v1164 = vadd.f32 %v1162, %v1163
          %1165 = vadd.xlane.f32.xlu0 %v1164
          %v1166 = vpop.xlane.xlu0 %1165
          %v1167 = vsel %vm939, %v1133, 0.0
          %v1168 = vsel %vm939, %v1134, 0.0
          %v1169 = vadd.f32 %v1167, %v1168
          %v1170 = vsel %vm939, %v1135, 0.0
          %v1171 = vadd.f32 %v1169, %v1170
          %v1172 = vsel %vm939, %v1136, 0.0
          %v1173 = vadd.f32 %v1171, %v1172
          %1174 = vadd.xlane.f32.xlu0 %v1173
          %v1175 = vpop.xlane.xlu0 %1174
          %v1176 = vsel %vm939, %v1137, 0.0
          %v1177 = vsel %vm939, %v1138, 0.0
          %v1178 = vadd.f32 %v1176, %v1177
          %v1179 = vsel %vm939, %v1139, 0.0
          %v1180 = vadd.f32 %v1178, %v1179
          %v1181 = vsel %vm939, %v1140, 0.0
          %v1182 = vadd.f32 %v1180, %v1181
          %1183 = vadd.xlane.f32.xlu0 %v1182
          %v1184 = vpop.xlane.xlu0 %1183
          %v1185 = vsel %vm939, %v1141, 0.0
          %v1186 = vsel %vm939, %v1142, 0.0
          %v1187 = vadd.f32 %v1185, %v1186
          %v1188 = vsel %vm939, %v1143, 0.0
          %v1189 = vadd.f32 %v1187, %v1188
          %v1190 = vsel %vm939, %v1144, 0.0
          %v1191 = vadd.f32 %v1189, %v1190
          %1192 = vadd.xlane.f32.xlu0 %v1191
          %v1193 = vpop.xlane.xlu0 %1192
          %v1194 = vsel %vm939, %v1145, 0.0
          %v1195 = vsel %vm939, %v1146, 0.0
          %v1196 = vadd.f32 %v1194, %v1195
          %v1197 = vsel %vm939, %v1147, 0.0
          %v1198 = vadd.f32 %v1196, %v1197
          %v1199 = vsel %vm939, %v1148, 0.0
          %v1200 = vadd.f32 %v1198, %v1199
          %1201 = vadd.xlane.f32.xlu0 %v1200
          %v1202 = vpop.xlane.xlu0 %1201
          %v1203 = vsel %vm939, %v1157, 0.0
          %v1204 = vsel %vm939, %v1166, 0.0
          %v1205 = vadd.f32 %v1203, %v1204
          %v1206 = vsel %vm939, %v1175, 0.0
          %v1207 = vadd.f32 %v1205, %v1206
          %v1208 = vsel %vm939, %v1184, 0.0
          %v1209 = vadd.f32 %v1207, %v1208
          %v1210 = vsel %vm939, %v1193, 0.0
          %v1211 = vadd.f32 %v1209, %v1210
          %v1212 = vsel %vm939, %v1202, 0.0
          %v1213 = vadd.f32 %v1211, %v1212
          %v1214 = vsub.f32 %v1004, %v1213
          %v1215 = vadd.f32 %v1004, 1e-10
          %v1216 = vrcp.pop %v1215
          %v1217 = vmul.f32 %v1214, %v1216
          %v1218 = vsel %vm666, %v1217, 0.0
          %1219 = vadd.xlane.f32.xlu0 %v1218
          %v1220 = vpop.xlane.xlu0 %1219
          %v1221 = vrot.slane %v1220, 4
          %v1222 = vadd.f32 %v1220, %v1221
          %v1223 = vrot.slane %v1222, 2
          %v1224 = vadd.f32 %v1222, %v1223
          %v1225 = vrot.slane %v1224, 1
          %v1226 = vadd.f32 %v1224, %v1225
          %s1227 = vtos %v1226
          %v1228 = vrcp.pop 2.0
          %s1229 = vtos %v1228
          %s1230 = smul.f32 %s1227, %s1229
          %v1231 = vsel %vm939, %v820, -inf
          %v1232 = vsel %vm939, %v828, -inf
          %v1233 = vmax.f32 %v1231, %v1232
          %v1234 = vsel %vm939, %v827, -inf
          %v1235 = vmax.f32 %v1233, %v1234
          %v1236 = vsel %vm939, %v829, -inf
          %v1237 = vmax.f32 %v1235, %v1236
          %1238 = vmax.xlane.f32.xlu0 %v1237
          %v1239 = vpop.xlane.xlu0 %1238
          %v1240 = vsel %vm939, %v837, -inf
          %v1241 = vsel %vm939, %v845, -inf
          %v1242 = vmax.f32 %v1240, %v1241
          %v1243 = vsel %vm939, %v844, -inf
          %v1244 = vmax.f32 %v1242, %v1243
          %v1245 = vsel %vm939, %v846, -inf
          %v1246 = vmax.f32 %v1244, %v1245
          %1247 = vmax.xlane.f32.xlu0 %v1246
          %v1248 = vpop.xlane.xlu0 %1247
          %v1249 = vsel %vm939, %v854, -inf
          %v1250 = vsel %vm939, %v862, -inf
          %v1251 = vmax.f32 %v1249, %v1250
          %v1252 = vsel %vm939, %v861, -inf
          %v1253 = vmax.f32 %v1251, %v1252
          %v1254 = vsel %vm939, %v863, -inf
          %v1255 = vmax.f32 %v1253, %v1254
          %1256 = vmax.xlane.f32.xlu0 %v1255
          %v1257 = vpop.xlane.xlu0 %1256
          %v1258 = vsel %vm939, %v871, -inf
          %v1259 = vsel %vm939, %v879, -inf
          %v1260 = vmax.f32 %v1258, %v1259
          %v1261 = vsel %vm939, %v878, -inf
          %v1262 = vmax.f32 %v1260, %v1261
          %v1263 = vsel %vm939, %v880, -inf
          %v1264 = vmax.f32 %v1262, %v1263
          %1265 = vmax.xlane.f32.xlu0 %v1264
          %v1266 = vpop.xlane.xlu0 %1265
          %v1267 = vsel %vm939, %v888, -inf
          %v1268 = vsel %vm939, %v896, -inf
          %v1269 = vmax.f32 %v1267, %v1268
          %v1270 = vsel %vm939, %v895, -inf
          %v1271 = vmax.f32 %v1269, %v1270
          %v1272 = vsel %vm939, %v897, -inf
          %v1273 = vmax.f32 %v1271, %v1272
          %1274 = vmax.xlane.f32.xlu0 %v1273
          %v1275 = vpop.xlane.xlu0 %1274
          %v1276 = vsel %vm939, %v905, -inf
          %v1277 = vsel %vm939, %v913, -inf
          %v1278 = vmax.f32 %v1276, %v1277
          %v1279 = vsel %vm939, %v912, -inf
          %v1280 = vmax.f32 %v1278, %v1279
          %v1281 = vsel %vm939, %v914, -inf
          %v1282 = vmax.f32 %v1280, %v1281
          %1283 = vmax.xlane.f32.xlu0 %v1282
          %v1284 = vpop.xlane.xlu0 %1283
          %v1285 = vsel %vm939, %v1239, -inf
          %v1286 = vsel %vm939, %v1248, -inf
          %v1287 = vsel %vm939, %v1257, -inf
          %v1288 = vsel %vm939, %v1266, -inf
          %v1289 = vsel %vm939, %v1275, -inf
          %v1290 = vmax.f32 %v1285, %v1289
          %v1291 = vsel %vm939, %v1284, -inf
          %v1292 = vmax.f32 %v1286, %v1291
          %v1293 = vmax.f32 %v1290, %v1292
          %v1294 = vmax.f32 %v1287, %v1288
          %v1295 = vmax.f32 %v1293, %v1294
          %v1298 = vunpack.c.l.s4 269488144
          %v1299 = vunpack.c.0.s8 %v1298
          %v1300 = vlaneseq
          %v1301 = vshrl.u32 %v1300, 7
          %v1302 = vsub.s32 %v1299, %v1301
          %v1303 = vrot.slane %v1295, %v1302
          %vm1305 = vcmp.eq.f32.partialorder %v680, %v1303
          %vm1306 = vcmp.eq.f32.partialorder %v681, %v1303
          %vm1307 = vcmp.eq.f32.partialorder %v682, %v1303
          %vm1308 = vcmp.eq.f32.partialorder %v683, %v1303
          %vm1309 = vcmp.eq.f32.partialorder %v684, %v1303
          %vm1310 = vcmp.eq.f32.partialorder %v685, %v1303
          %v1311 = vcombine.low %v687, %v688
          %v1312 = vcombine.low %v689, %v690
          %v1314 = vunpack.c.l.s4 1983009808
          %v1315 = vunpack.c.0.s8 %v1314
          %v1316 = vlaneseq
          %v1317 = vshrl.u32 %v1316, 7
          %v1318 = vsub.s32 %v1315, %v1317
          %v1319 = vrot.slane %v1311, %v1318
          %v1321 = vunpack.c.l.s4 1983009808
          %v1322 = vunpack.c.0.s8 %v1321
          %v1323 = vlaneseq
          %v1324 = vshrl.u32 %v1323, 7
          %v1325 = vsub.s32 %v1322, %v1324
          %v1326 = vrot.slane %v1312, %v1325
          %v1327 = vcombine.low %v1319, %v1326
          %v1328 = vcombine.low %v691, %v692
          %v1329 = vcombine.low %v693, %v694
          %v1331 = vunpack.c.l.s4 1983009808
          %v1332 = vunpack.c.0.s8 %v1331
          %v1333 = vlaneseq
          %v1334 = vshrl.u32 %v1333, 7
          %v1335 = vsub.s32 %v1332, %v1334
          %v1336 = vrot.slane %v1328, %v1335
          %v1338 = vunpack.c.l.s4 1983009808
          %v1339 = vunpack.c.0.s8 %v1338
          %v1340 = vlaneseq
          %v1341 = vshrl.u32 %v1340, 7
          %v1342 = vsub.s32 %v1339, %v1341
          %v1343 = vrot.slane %v1329, %v1342
          %v1344 = vcombine.low %v1336, %v1343
          %v1345 = vcombine.low %v695, %v696
          %v1346 = vcombine.low %v697, %v698
          %v1348 = vunpack.c.l.s4 1983009808
          %v1349 = vunpack.c.0.s8 %v1348
          %v1350 = vlaneseq
          %v1351 = vshrl.u32 %v1350, 7
          %v1352 = vsub.s32 %v1349, %v1351
          %v1353 = vrot.slane %v1345, %v1352
          %v1355 = vunpack.c.l.s4 1983009808
          %v1356 = vunpack.c.0.s8 %v1355
          %v1357 = vlaneseq
          %v1358 = vshrl.u32 %v1357, 7
          %v1359 = vsub.s32 %v1356, %v1358
          %v1360 = vrot.slane %v1346, %v1359
          %v1361 = vcombine.low %v1353, %v1360
          %v1362 = vcombine.low %v699, %v700
          %v1363 = vcombine.low %v701, %v702
          %v1365 = vunpack.c.l.s4 1983009808
          %v1366 = vunpack.c.0.s8 %v1365
          %v1367 = vlaneseq
          %v1368 = vshrl.u32 %v1367, 7
          %v1369 = vsub.s32 %v1366, %v1368
          %v1370 = vrot.slane %v1362, %v1369
          %v1372 = vunpack.c.l.s4 1983009808
          %v1373 = vunpack.c.0.s8 %v1372
          %v1374 = vlaneseq
          %v1375 = vshrl.u32 %v1374, 7
          %v1376 = vsub.s32 %v1373, %v1375
          %v1377 = vrot.slane %v1363, %v1376
          %v1378 = vcombine.low %v1370, %v1377
          %v1379 = vcombine.low %v703, %v704
          %v1380 = vcombine.low %v705, %v706
          %v1382 = vunpack.c.l.s4 1983009808
          %v1383 = vunpack.c.0.s8 %v1382
          %v1384 = vlaneseq
          %v1385 = vshrl.u32 %v1384, 7
          %v1386 = vsub.s32 %v1383, %v1385
          %v1387 = vrot.slane %v1379, %v1386
          %v1389 = vunpack.c.l.s4 1983009808
          %v1390 = vunpack.c.0.s8 %v1389
          %v1391 = vlaneseq
          %v1392 = vshrl.u32 %v1391, 7
          %v1393 = vsub.s32 %v1390, %v1392
          %v1394 = vrot.slane %v1380, %v1393
          %v1395 = vcombine.low %v1387, %v1394
          %v1396 = vcombine.low %v707, %v708
          %v1397 = vcombine.low %v709, %v710
          %v1399 = vunpack.c.l.s4 1983009808
          %v1400 = vunpack.c.0.s8 %v1399
          %v1401 = vlaneseq
          %v1402 = vshrl.u32 %v1401, 7
          %v1403 = vsub.s32 %v1400, %v1402
          %v1404 = vrot.slane %v1396, %v1403
          %v1406 = vunpack.c.l.s4 1983009808
          %v1407 = vunpack.c.0.s8 %v1406
          %v1408 = vlaneseq
          %v1409 = vshrl.u32 %v1408, 7
          %v1410 = vsub.s32 %v1407, %v1409
          %v1411 = vrot.slane %v1397, %v1410
          %v1412 = vcombine.low %v1404, %v1411
          %v1413 = vsel %vm1305, %v1327, 3072
          %v1414 = vsel %vm1306, %v1344, 3072
          %v1415 = vsel %vm1307, %v1361, 3072
          %v1416 = vsel %vm1308, %v1378, 3072
          %v1417 = vsel %vm1309, %v1395, 3072
          %v1418 = vsel %vm1310, %v1412, 3072
          %v1419 = vcombine.high %v1413, %v1413
          %v1421 = vunpack.c.l.s4 1983009808
          %v1422 = vunpack.c.0.s8 %v1421
          %v1423 = vlaneseq
          %v1424 = vshrl.u32 %v1423, 7
          %v1425 = vsub.s32 %v1422, %v1424
          %v1426 = vrot.slane %v1413, %v1425
          %v1428 = vunpack.c.l.s4 1983009808
          %v1429 = vunpack.c.0.s8 %v1428
          %v1430 = vlaneseq
          %v1431 = vshrl.u32 %v1430, 7
          %v1432 = vsub.s32 %v1429, %v1431
          %v1433 = vrot.slane %v1419, %v1432
          %v1434 = vcombine.high %v1426, %v1426
          %v1435 = vcombine.high %v1433, %v1433
          %v1436 = vcombine.high %v1414, %v1414
          %v1438 = vunpack.c.l.s4 1983009808
          %v1439 = vunpack.c.0.s8 %v1438
          %v1440 = vlaneseq
          %v1441 = vshrl.u32 %v1440, 7
          %v1442 = vsub.s32 %v1439, %v1441
          %v1443 = vrot.slane %v1414, %v1442
          %v1445 = vunpack.c.l.s4 1983009808
          %v1446 = vunpack.c.0.s8 %v1445
          %v1447 = vlaneseq
          %v1448 = vshrl.u32 %v1447, 7
          %v1449 = vsub.s32 %v1446, %v1448
          %v1450 = vrot.slane %v1436, %v1449
          %v1451 = vcombine.high %v1443, %v1443
          %v1452 = vcombine.high %v1450, %v1450
          %v1453 = vcombine.high %v1415, %v1415
          %v1455 = vunpack.c.l.s4 1983009808
          %v1456 = vunpack.c.0.s8 %v1455
          %v1457 = vlaneseq
          %v1458 = vshrl.u32 %v1457, 7
          %v1459 = vsub.s32 %v1456, %v1458
          %v1460 = vrot.slane %v1415, %v1459
          %v1462 = vunpack.c.l.s4 1983009808
          %v1463 = vunpack.c.0.s8 %v1462
          %v1464 = vlaneseq
          %v1465 = vshrl.u32 %v1464, 7
          %v1466 = vsub.s32 %v1463, %v1465
          %v1467 = vrot.slane %v1453, %v1466
          %v1468 = vcombine.high %v1460, %v1460
          %v1469 = vcombine.high %v1467, %v1467
          %v1470 = vcombine.high %v1416, %v1416
          %v1472 = vunpack.c.l.s4 1983009808
          %v1473 = vunpack.c.0.s8 %v1472
          %v1474 = vlaneseq
          %v1475 = vshrl.u32 %v1474, 7
          %v1476 = vsub.s32 %v1473, %v1475
          %v1477 = vrot.slane %v1416, %v1476
          %v1479 = vunpack.c.l.s4 1983009808
          %v1480 = vunpack.c.0.s8 %v1479
          %v1481 = vlaneseq
          %v1482 = vshrl.u32 %v1481, 7
          %v1483 = vsub.s32 %v1480, %v1482
          %v1484 = vrot.slane %v1470, %v1483
          %v1485 = vcombine.high %v1477, %v1477
          %v1486 = vcombine.high %v1484, %v1484
          %v1487 = vcombine.high %v1417, %v1417
          %v1489 = vunpack.c.l.s4 1983009808
          %v1490 = vunpack.c.0.s8 %v1489
          %v1491 = vlaneseq
          %v1492 = vshrl.u32 %v1491, 7
          %v1493 = vsub.s32 %v1490, %v1492
          %v1494 = vrot.slane %v1417, %v1493
          %v1496 = vunpack.c.l.s4 1983009808
          %v1497 = vunpack.c.0.s8 %v1496
          %v1498 = vlaneseq
          %v1499 = vshrl.u32 %v1498, 7
          %v1500 = vsub.s32 %v1497, %v1499
          %v1501 = vrot.slane %v1487, %v1500
          %v1502 = vcombine.high %v1494, %v1494
          %v1503 = vcombine.high %v1501, %v1501
          %v1504 = vcombine.high %v1418, %v1418
          %v1506 = vunpack.c.l.s4 1983009808
          %v1507 = vunpack.c.0.s8 %v1506
          %v1508 = vlaneseq
          %v1509 = vshrl.u32 %v1508, 7
          %v1510 = vsub.s32 %v1507, %v1509
          %v1511 = vrot.slane %v1418, %v1510
          %v1513 = vunpack.c.l.s4 1983009808
          %v1514 = vunpack.c.0.s8 %v1513
          %v1515 = vlaneseq
          %v1516 = vshrl.u32 %v1515, 7
          %v1517 = vsub.s32 %v1514, %v1516
          %v1518 = vrot.slane %v1504, %v1517
          %v1519 = vcombine.high %v1511, %v1511
          %v1520 = vcombine.high %v1518, %v1518
          %v1521 = vsel %vm939, %v1426, 2147483647
          %v1522 = vsel %vm939, %v1434, 2147483647
          %vm1523 = vcmp.lt.s32.totalorder %v1521, %v1522
          %v1524 = vsel %vm1523, %v1521, %v1522
          %v1525 = vsel %vm939, %v1433, 2147483647
          %vm1526 = vcmp.lt.s32.totalorder %v1524, %v1525
          %v1527 = vsel %vm1526, %v1524, %v1525
          %v1528 = vsel %vm939, %v1435, 2147483647
          %vm1529 = vcmp.lt.s32.totalorder %v1527, %v1528
          %v1530 = vsel %vm1529, %v1527, %v1528
          %v1531 = vand.u32 %v1530, 65535
          %v1532 = vshra.s32 %v1530, 16
          %v1533 = vcvt.s32.f32 %v1531
          %v1534 = vcvt.s32.f32 %v1532
          %1535 = vmin.xlane.f32.xlu0 %v1534
          %v1536 = vpop.xlane.xlu0 %1535
          %vm1537 = vcmp.eq.f32.partialorder %v1534, %v1536
          %v1538 = vsel %vm1537, %v1533, inf
          %1539 = vmin.xlane.f32.xlu0 %v1538
          %v1540 = vpop.xlane.xlu0 %1539
          %v1541 = vcvt.f32.s32 %v1540
          %v1542 = vcvt.f32.s32 %v1536
          %v1543 = vshll.u32 %v1542, 16
          %v1544 = vadd.s32 %v1543, %v1541
          %v1545 = vsel %vm939, %v1443, 2147483647
          %v1546 = vsel %vm939, %v1451, 2147483647
          %vm1547 = vcmp.lt.s32.totalorder %v1545, %v1546
          %v1548 = vsel %vm1547, %v1545, %v1546
          %v1549 = vsel %vm939, %v1450, 2147483647
          %vm1550 = vcmp.lt.s32.totalorder %v1548, %v1549
          %v1551 = vsel %vm1550, %v1548, %v1549
          %v1552 = vsel %vm939, %v1452, 2147483647
          %vm1553 = vcmp.lt.s32.totalorder %v1551, %v1552
          %v1554 = vsel %vm1553, %v1551, %v1552
          %v1555 = vand.u32 %v1554, 65535
          %v1556 = vshra.s32 %v1554, 16
          %v1557 = vcvt.s32.f32 %v1555
          %v1558 = vcvt.s32.f32 %v1556
          %1559 = vmin.xlane.f32.xlu0 %v1558
          %v1560 = vpop.xlane.xlu0 %1559
          %vm1561 = vcmp.eq.f32.partialorder %v1558, %v1560
          %v1562 = vsel %vm1561, %v1557, inf
          %1563 = vmin.xlane.f32.xlu0 %v1562
          %v1564 = vpop.xlane.xlu0 %1563
          %v1565 = vcvt.f32.s32 %v1564
          %v1566 = vcvt.f32.s32 %v1560
          %v1567 = vshll.u32 %v1566, 16
          %v1568 = vadd.s32 %v1567, %v1565
          %v1569 = vsel %vm939, %v1460, 2147483647
          %v1570 = vsel %vm939, %v1468, 2147483647
          %vm1571 = vcmp.lt.s32.totalorder %v1569, %v1570
          %v1572 = vsel %vm1571, %v1569, %v1570
          %v1573 = vsel %vm939, %v1467, 2147483647
          %vm1574 = vcmp.lt.s32.totalorder %v1572, %v1573
          %v1575 = vsel %vm1574, %v1572, %v1573
          %v1576 = vsel %vm939, %v1469, 2147483647
          %vm1577 = vcmp.lt.s32.totalorder %v1575, %v1576
          %v1578 = vsel %vm1577, %v1575, %v1576
          %v1579 = vand.u32 %v1578, 65535
          %v1580 = vshra.s32 %v1578, 16
          %v1581 = vcvt.s32.f32 %v1579
          %v1582 = vcvt.s32.f32 %v1580
          %1583 = vmin.xlane.f32.xlu0 %v1582
          %v1584 = vpop.xlane.xlu0 %1583
          %vm1585 = vcmp.eq.f32.partialorder %v1582, %v1584
          %v1586 = vsel %vm1585, %v1581, inf
          %1587 = vmin.xlane.f32.xlu0 %v1586
          %v1588 = vpop.xlane.xlu0 %1587
          %v1589 = vcvt.f32.s32 %v1588
          %v1590 = vcvt.f32.s32 %v1584
          %v1591 = vshll.u32 %v1590, 16
          %v1592 = vadd.s32 %v1591, %v1589
          %v1593 = vsel %vm939, %v1477, 2147483647
          %v1594 = vsel %vm939, %v1485, 2147483647
          %vm1595 = vcmp.lt.s32.totalorder %v1593, %v1594
          %v1596 = vsel %vm1595, %v1593, %v1594
          %v1597 = vsel %vm939, %v1484, 2147483647
          %vm1598 = vcmp.lt.s32.totalorder %v1596, %v1597
          %v1599 = vsel %vm1598, %v1596, %v1597
          %v1600 = vsel %vm939, %v1486, 2147483647
          %vm1601 = vcmp.lt.s32.totalorder %v1599, %v1600
          %v1602 = vsel %vm1601, %v1599, %v1600
          %v1603 = vand.u32 %v1602, 65535
          %v1604 = vshra.s32 %v1602, 16
          %v1605 = vcvt.s32.f32 %v1603
          %v1606 = vcvt.s32.f32 %v1604
          %1607 = vmin.xlane.f32.xlu0 %v1606
          %v1608 = vpop.xlane.xlu0 %1607
          %vm1609 = vcmp.eq.f32.partialorder %v1606, %v1608
          %v1610 = vsel %vm1609, %v1605, inf
          %1611 = vmin.xlane.f32.xlu0 %v1610
          %v1612 = vpop.xlane.xlu0 %1611
          %v1613 = vcvt.f32.s32 %v1612
          %v1614 = vcvt.f32.s32 %v1608
          %v1615 = vshll.u32 %v1614, 16
          %v1616 = vadd.s32 %v1615, %v1613
          %v1617 = vsel %vm939, %v1494, 2147483647
          %v1618 = vsel %vm939, %v1502, 2147483647
          %vm1619 = vcmp.lt.s32.totalorder %v1617, %v1618
          %v1620 = vsel %vm1619, %v1617, %v1618
          %v1621 = vsel %vm939, %v1501, 2147483647
          %vm1622 = vcmp.lt.s32.totalorder %v1620, %v1621
          %v1623 = vsel %vm1622, %v1620, %v1621
          %v1624 = vsel %vm939, %v1503, 2147483647
          %vm1625 = vcmp.lt.s32.totalorder %v1623, %v1624
          %v1626 = vsel %vm1625, %v1623, %v1624
          %v1627 = vand.u32 %v1626, 65535
          %v1628 = vshra.s32 %v1626, 16
          %v1629 = vcvt.s32.f32 %v1627
          %v1630 = vcvt.s32.f32 %v1628
          %1631 = vmin.xlane.f32.xlu0 %v1630
          %v1632 = vpop.xlane.xlu0 %1631
          %vm1633 = vcmp.eq.f32.partialorder %v1630, %v1632
          %v1634 = vsel %vm1633, %v1629, inf
          %1635 = vmin.xlane.f32.xlu0 %v1634
          %v1636 = vpop.xlane.xlu0 %1635
          %v1637 = vcvt.f32.s32 %v1636
          %v1638 = vcvt.f32.s32 %v1632
          %v1639 = vshll.u32 %v1638, 16
          %v1640 = vadd.s32 %v1639, %v1637
          %v1641 = vsel %vm939, %v1511, 2147483647
          %v1642 = vsel %vm939, %v1519, 2147483647
          %vm1643 = vcmp.lt.s32.totalorder %v1641, %v1642
          %v1644 = vsel %vm1643, %v1641, %v1642
          %v1645 = vsel %vm939, %v1518, 2147483647
          %vm1646 = vcmp.lt.s32.totalorder %v1644, %v1645
          %v1647 = vsel %vm1646, %v1644, %v1645
          %v1648 = vsel %vm939, %v1520, 2147483647
          %vm1649 = vcmp.lt.s32.totalorder %v1647, %v1648
          %v1650 = vsel %vm1649, %v1647, %v1648
          %v1651 = vand.u32 %v1650, 65535
          %v1652 = vshra.s32 %v1650, 16
          %v1653 = vcvt.s32.f32 %v1651
          %v1654 = vcvt.s32.f32 %v1652
          %1655 = vmin.xlane.f32.xlu0 %v1654
          %v1656 = vpop.xlane.xlu0 %1655
          %vm1657 = vcmp.eq.f32.partialorder %v1654, %v1656
          %v1658 = vsel %vm1657, %v1653, inf
          %1659 = vmin.xlane.f32.xlu0 %v1658
          %v1660 = vpop.xlane.xlu0 %1659
          %v1661 = vcvt.f32.s32 %v1660
          %v1662 = vcvt.f32.s32 %v1656
          %v1663 = vshll.u32 %v1662, 16
          %v1664 = vadd.s32 %v1663, %v1661
          %v1665 = vsel %vm939, %v1544, 2147483647
          %v1666 = vsel %vm939, %v1568, 2147483647
          %v1667 = vsel %vm939, %v1592, 2147483647
          %v1668 = vsel %vm939, %v1616, 2147483647
          %v1669 = vsel %vm939, %v1640, 2147483647
          %vm1670 = vcmp.lt.s32.totalorder %v1665, %v1669
          %v1671 = vsel %vm1670, %v1665, %v1669
          %v1672 = vsel %vm939, %v1664, 2147483647
          %vm1673 = vcmp.lt.s32.totalorder %v1666, %v1672
          %v1674 = vsel %vm1673, %v1666, %v1672
          %vm1675 = vcmp.lt.s32.totalorder %v1671, %v1674
          %v1676 = vsel %vm1675, %v1671, %v1674
          %vm1677 = vcmp.lt.s32.totalorder %v1667, %v1668
          %v1678 = vsel %vm1677, %v1667, %v1668
          %vm1679 = vcmp.lt.s32.totalorder %v1676, %v1678
          %v1680 = vsel %vm1679, %v1676, %v1678
          %v1681 = vcvt.s32.f32 %v1680
          %v1682 = vmul.f32 %v1681, 0.005554527
          %v1683 = vsub.f32 %v1682, 0.1
          %vm1684 = vcmp.ge.f32.partialorder %v783, %v1683
          %vm1685 = vcmp.ge.f32.partialorder %v784, %v1683
          %vm1686 = vcmp.ge.f32.partialorder %v785, %v1683
          %vm1687 = vcmp.ge.f32.partialorder %v786, %v1683
          %vm1688 = vcmp.ge.f32.partialorder %v787, %v1683
          %vm1689 = vcmp.ge.f32.partialorder %v788, %v1683
          %vm1690 = vcmp.ge.f32.partialorder %v789, %v1683
          %vm1691 = vcmp.ge.f32.partialorder %v790, %v1683
          %vm1692 = vcmp.ge.f32.partialorder %v791, %v1683
          %vm1693 = vcmp.ge.f32.partialorder %v792, %v1683
          %vm1694 = vcmp.ge.f32.partialorder %v793, %v1683
          %vm1695 = vcmp.ge.f32.partialorder %v794, %v1683
          %vm1696 = vcmp.ge.f32.partialorder %v795, %v1683
          %vm1697 = vcmp.ge.f32.partialorder %v796, %v1683
          %vm1698 = vcmp.ge.f32.partialorder %v797, %v1683
          %vm1699 = vcmp.ge.f32.partialorder %v798, %v1683
          %vm1700 = vcmp.ge.f32.partialorder %v799, %v1683
          %vm1701 = vcmp.ge.f32.partialorder %v800, %v1683
          %vm1702 = vcmp.ge.f32.partialorder %v801, %v1683
          %vm1703 = vcmp.ge.f32.partialorder %v802, %v1683
          %vm1704 = vcmp.ge.f32.partialorder %v803, %v1683
          %vm1705 = vcmp.ge.f32.partialorder %v804, %v1683
          %vm1706 = vcmp.ge.f32.partialorder %v805, %v1683
          %vm1707 = vcmp.ge.f32.partialorder %v806, %v1683
          %v1708 = vadd.f32 %v1682, 0.1
          %vm1709 = vcmp.le.f32.partialorder %v783, %v1708
          %vm1710 = vcmp.le.f32.partialorder %v784, %v1708
          %vm1711 = vcmp.le.f32.partialorder %v785, %v1708
          %vm1712 = vcmp.le.f32.partialorder %v786, %v1708
          %vm1713 = vcmp.le.f32.partialorder %v787, %v1708
          %vm1714 = vcmp.le.f32.partialorder %v788, %v1708
          %vm1715 = vcmp.le.f32.partialorder %v789, %v1708
          %vm1716 = vcmp.le.f32.partialorder %v790, %v1708
          %vm1717 = vcmp.le.f32.partialorder %v791, %v1708
          %vm1718 = vcmp.le.f32.partialorder %v792, %v1708
          %vm1719 = vcmp.le.f32.partialorder %v793, %v1708
          %vm1720 = vcmp.le.f32.partialorder %v794, %v1708
          %vm1721 = vcmp.le.f32.partialorder %v795, %v1708
          %vm1722 = vcmp.le.f32.partialorder %v796, %v1708
          %vm1723 = vcmp.le.f32.partialorder %v797, %v1708
          %vm1724 = vcmp.le.f32.partialorder %v798, %v1708
          %vm1725 = vcmp.le.f32.partialorder %v799, %v1708
          %vm1726 = vcmp.le.f32.partialorder %v800, %v1708
          %vm1727 = vcmp.le.f32.partialorder %v801, %v1708
          %vm1728 = vcmp.le.f32.partialorder %v802, %v1708
          %vm1729 = vcmp.le.f32.partialorder %v803, %v1708
          %vm1730 = vcmp.le.f32.partialorder %v804, %v1708
          %vm1731 = vcmp.le.f32.partialorder %v805, %v1708
          %vm1732 = vcmp.le.f32.partialorder %v806, %v1708
          %vm1733 = vmand %vm1684, %vm1709
          %vm1734 = vmand %vm1685, %vm1710
          %vm1735 = vmand %vm1686, %vm1711
          %vm1736 = vmand %vm1687, %vm1712
          %vm1737 = vmand %vm1688, %vm1713
          %vm1738 = vmand %vm1689, %vm1714
          %vm1739 = vmand %vm1690, %vm1715
          %vm1740 = vmand %vm1691, %vm1716
          %vm1741 = vmand %vm1692, %vm1717
          %vm1742 = vmand %vm1693, %vm1718
          %vm1743 = vmand %vm1694, %vm1719
          %vm1744 = vmand %vm1695, %vm1720
          %vm1745 = vmand %vm1696, %vm1721
          %vm1746 = vmand %vm1697, %vm1722
          %vm1747 = vmand %vm1698, %vm1723
          %vm1748 = vmand %vm1699, %vm1724
          %vm1749 = vmand %vm1700, %vm1725
          %vm1750 = vmand %vm1701, %vm1726
          %vm1751 = vmand %vm1702, %vm1727
          %vm1752 = vmand %vm1703, %vm1728
          %vm1753 = vmand %vm1704, %vm1729
          %vm1754 = vmand %vm1705, %vm1730
          %vm1755 = vmand %vm1706, %vm1731
          %vm1756 = vmand %vm1707, %vm1732
          %v1757 = vsel %vm1733, %v820, 0.0
          %v1758 = vsel %vm1734, %v828, 0.0
          %v1759 = vsel %vm1735, %v827, 0.0
          %v1760 = vsel %vm1736, %v829, 0.0
          %v1761 = vsel %vm1737, %v837, 0.0
          %v1762 = vsel %vm1738, %v845, 0.0
          %v1763 = vsel %vm1739, %v844, 0.0
          %v1764 = vsel %vm1740, %v846, 0.0
          %v1765 = vsel %vm1741, %v854, 0.0
          %v1766 = vsel %vm1742, %v862, 0.0
          %v1767 = vsel %vm1743, %v861, 0.0
          %v1768 = vsel %vm1744, %v863, 0.0
          %v1769 = vsel %vm1745, %v871, 0.0
          %v1770 = vsel %vm1746, %v879, 0.0
          %v1771 = vsel %vm1747, %v878, 0.0
          %v1772 = vsel %vm1748, %v880, 0.0
          %v1773 = vsel %vm1749, %v888, 0.0
          %v1774 = vsel %vm1750, %v896, 0.0
          %v1775 = vsel %vm1751, %v895, 0.0
          %v1776 = vsel %vm1752, %v897, 0.0
          %v1777 = vsel %vm1753, %v905, 0.0
          %v1778 = vsel %vm1754, %v913, 0.0
          %v1779 = vsel %vm1755, %v912, 0.0
          %v1780 = vsel %vm1756, %v914, 0.0
          %v1781 = vsel %vm939, %v1757, 0.0
          %v1782 = vsel %vm939, %v1758, 0.0
          %v1783 = vadd.f32 %v1781, %v1782
          %v1784 = vsel %vm939, %v1759, 0.0
          %v1785 = vadd.f32 %v1783, %v1784
          %v1786 = vsel %vm939, %v1760, 0.0
          %v1787 = vadd.f32 %v1785, %v1786
          %1788 = vadd.xlane.f32.xlu0 %v1787
          %v1789 = vpop.xlane.xlu0 %1788
          %v1790 = vsel %vm939, %v1761, 0.0
          %v1791 = vsel %vm939, %v1762, 0.0
          %v1792 = vadd.f32 %v1790, %v1791
          %v1793 = vsel %vm939, %v1763, 0.0
          %v1794 = vadd.f32 %v1792, %v1793
          %v1795 = vsel %vm939, %v1764, 0.0
          %v1796 = vadd.f32 %v1794, %v1795
          %1797 = vadd.xlane.f32.xlu0 %v1796
          %v1798 = vpop.xlane.xlu0 %1797
          %v1799 = vsel %vm939, %v1765, 0.0
          %v1800 = vsel %vm939, %v1766, 0.0
          %v1801 = vadd.f32 %v1799, %v1800
          %v1802 = vsel %vm939, %v1767, 0.0
          %v1803 = vadd.f32 %v1801, %v1802
          %v1804 = vsel %vm939, %v1768, 0.0
          %v1805 = vadd.f32 %v1803, %v1804
          %1806 = vadd.xlane.f32.xlu0 %v1805
          %v1807 = vpop.xlane.xlu0 %1806
          %v1808 = vsel %vm939, %v1769, 0.0
          %v1809 = vsel %vm939, %v1770, 0.0
          %v1810 = vadd.f32 %v1808, %v1809
          %v1811 = vsel %vm939, %v1771, 0.0
          %v1812 = vadd.f32 %v1810, %v1811
          %v1813 = vsel %vm939, %v1772, 0.0
          %v1814 = vadd.f32 %v1812, %v1813
          %1815 = vadd.xlane.f32.xlu0 %v1814
          %v1816 = vpop.xlane.xlu0 %1815
          %v1817 = vsel %vm939, %v1773, 0.0
          %v1818 = vsel %vm939, %v1774, 0.0
          %v1819 = vadd.f32 %v1817, %v1818
          %v1820 = vsel %vm939, %v1775, 0.0
          %v1821 = vadd.f32 %v1819, %v1820
          %v1822 = vsel %vm939, %v1776, 0.0
          %v1823 = vadd.f32 %v1821, %v1822
          %1824 = vadd.xlane.f32.xlu0 %v1823
          %v1825 = vpop.xlane.xlu0 %1824
          %v1826 = vsel %vm939, %v1777, 0.0
          %v1827 = vsel %vm939, %v1778, 0.0
          %v1828 = vadd.f32 %v1826, %v1827
          %v1829 = vsel %vm939, %v1779, 0.0
          %v1830 = vadd.f32 %v1828, %v1829
          %v1831 = vsel %vm939, %v1780, 0.0
          %v1832 = vadd.f32 %v1830, %v1831
          %1833 = vadd.xlane.f32.xlu0 %v1832
          %v1834 = vpop.xlane.xlu0 %1833
          %v1835 = vsel %vm939, %v1789, 0.0
          %v1836 = vsel %vm939, %v1798, 0.0
          %v1837 = vadd.f32 %v1835, %v1836
          %v1838 = vsel %vm939, %v1807, 0.0
          %v1839 = vadd.f32 %v1837, %v1838
          %v1840 = vsel %vm939, %v1816, 0.0
          %v1841 = vadd.f32 %v1839, %v1840
          %v1842 = vsel %vm939, %v1825, 0.0
          %v1843 = vadd.f32 %v1841, %v1842
          %v1844 = vsel %vm939, %v1834, 0.0
          %v1845 = vadd.f32 %v1843, %v1844
          %v1846 = vsub.f32 %v1004, %v1845
          %v1847 = vmul.f32 %v1846, %v1216
          %v1848 = vsel %vm666, %v1847, 0.0
          %1849 = vadd.xlane.f32.xlu0 %v1848
          %v1850 = vpop.xlane.xlu0 %1849
          %v1851 = vrot.slane %v1850, 4
          %v1852 = vadd.f32 %v1850, %v1851
          %v1853 = vrot.slane %v1852, 2
          %v1854 = vadd.f32 %v1852, %v1853
          %v1855 = vrot.slane %v1854, 1
          %v1856 = vadd.f32 %v1854, %v1855
          %s1857 = vtos %v1856
          %v1858 = vrcp.pop 2.0
          %s1859 = vtos %v1858
          %s1860 = smul.f32 %s1857, %s1859
          %s1861 = sadd.f32 %s627, %s679
          %s1862 = sadd.f32 %s1861, %s1230
          %s1863 = sadd.f32 %s1862, %s1860
          %vm1864 = vcmp.eq.s32.totalorder %v687, 0
          %v1865 = vstv %s1863
          %v1866 = vsel %vm1864, %v1865, 0.0
          %vm1867 = vcmp.eq.s32.totalorder %v687, 1
          %v1868 = vstv %s627
          %v1869 = vsel %vm1867, %v1868, 0.0
          %v1870 = vadd.f32 %v1866, %v1869
          %vm1871 = vcmp.eq.s32.totalorder %v687, 2
          %v1872 = vstv %s679
          %v1873 = vsel %vm1871, %v1872, 0.0
          %v1874 = vadd.f32 %v1870, %v1873
          %vm1875 = vcmp.eq.s32.totalorder %v687, 3
          %v1876 = vstv %s1230
          %v1877 = vsel %vm1875, %v1876, 0.0
          %v1878 = vadd.f32 %v1874, %v1877
          %vm1879 = vcmp.eq.s32.totalorder %v687, 4
          %v1880 = vstv %s1860
          %v1881 = vsel %vm1879, %v1880, 0.0
          %v1882 = vadd.f32 %v1878, %v1881
          %1883 = vst [vmem:[#allocation9] sm:$0x1] %v1882
        $region48: #{tpu_custom_call.1} parent=31 // pred_fallthru
          _
        // Predicated region
        $region49: #{tpu_custom_call.1} parent=31 // pred_check
          %p1884 = pneg %p100
        $region50: #{tpu_custom_call.1} parent=31 // pred_check_branch
          %1886 = sbr.rel (%p1884) target = $region52
        $region51: #{tpu_custom_call.1} parent=31 // pred_region
          %s1888 = ssub.s32 16, 16
          %1889 = vsyncadd [#allocation6], %s1888
          %s1891 = sshll.u32 [#allocation9], 4
          %s1892 = int_to_ptr.vmem [resolvable:$true] %s1891
          %1894 = dma.vmem_to_hbm [thread:$0]  %s1892, 16, %s3, [#allocation6]
        $region52: #{tpu_custom_call.1} parent=31 // pred_fallthru
          _
        // Predicated region
        $region53: #{tpu_custom_call.1} parent=31 // pred_check
          %p1895 = pneg %p100
        $region54: #{tpu_custom_call.1} parent=31 // pred_check_branch
          %1897 = sbr.rel (%p1895) target = $region56
        $region55: #{tpu_custom_call.1} parent=31 // pred_region
          %1898 = dma.done [#allocation6], 16
        $region56: #{tpu_custom_call.1} parent=31 // pred_fallthru
          _
      $region32: #{tpu_custom_call.1} parent=5 // pred_fallthru
        _
      %p1899 = scmp.le.s32.totalorder 2, %s14
      // Predicated region
      $region57: #{tpu_custom_call.1} parent=5 // pred_check
        %p1900 = pneg %p1899
      $region58: #{tpu_custom_call.1} parent=5 // pred_check_branch
        %1902 = sbr.rel (%p1900) target = $region60
      $region59: #{tpu_custom_call.1} parent=5 // pred_region
        %s1903 = ssub.s32 %s14, 2
      $region60: #{tpu_custom_call.1} parent=5 // pred_fallthru
        _
    $region6: #{tpu_custom_call.1} parent=1 // loop_footer
      %s18 = sadd.s32 1, %s14
    $region7: #{tpu_custom_call.1} parent=1 // loop_footer_branch
      %13 = sbr.rel target = $region3
    $region8: #{tpu_custom_call.1} parent=1 // loop_exit
      _
    %1904 = vsyncpa [#allocation5], 1
    %s1905 = scalar_lea.sflag [#allocation5], 1
    %1906 = vsyncpa %s1905, 1
    %1907 = vsyncpa [#allocation8], 1
    %s1908 = scalar_lea.sflag [#allocation8], 1
    %1909 = vsyncpa %s1908, 1
    %1910 = vsyncpa [#allocation6], 1
    %s1911 = scalar_lea.sflag [#allocation6], 1
    %1912 = vsyncpa %s1911, 1

</llo_original>
